<compile_context>
chip_gen: v5e
topology: v5e:2x2
jax: 0.10.0
libtpu: 0.0.40
codegen_flags: <defaults>
</compile_context>

<pallas_src>
import jax
import jax.numpy as jnp
import numpy as np
from jax import lax
from jax.experimental import pallas as pl
from jax.experimental.pallas import tpu as pltpu

BN_EPS = 1e-5
KH = KW = 3


def _bn_relu(y, gb):
    # nn.BatchNorm2d in train mode: biased batch stats over (N, H, W) == rows of y.
    gamma = gb[0:1, :]
    beta = gb[1:2, :]
    mean = jnp.mean(y, axis=0, keepdims=True)
    var = jnp.mean(jnp.square(y - mean), axis=0, keepdims=True)
    scale = gamma * lax.rsqrt(var + BN_EPS)          # fold BN affine into scale/shift
    return jnp.maximum(y * scale + (beta - mean * scale), 0.0)


def _make_fused_kernel(N, Cin, Cmid, Cout, Hp, Wp):
    H1, W1 = Hp - KH + 1, Wp - KW + 1    # after conv1 (padding=0)
    H2, W2 = H1 - KH + 1, W1 - KW + 1    # after conv2 (padding=0)

    def kernel(x_ref, w1_ref, w2_ref, gb1_ref, gb2_ref,
               o_ref, patch1_ref, patch2_ref):
        # ---- 2x2 max pool: 4 window taps on the leading axis; rows=(n,oh,ow), cols=Cin
        p = jnp.maximum(jnp.maximum(x_ref[0], x_ref[1]),
                        jnp.maximum(x_ref[2], x_ref[3]))          # (N*Hp*Wp, Cin)

        # ---- conv1: im2col entirely in VMEM (static slice stores), one MXU matmul.
        # Conv bias omitted: BatchNorm subtracts the batch mean, so it cancels exactly.
        for n in range(N):
            for oh in range(H1):
                r = (n * H1 + oh) * W1
                for kh in range(KH):
                    s = (n * Hp + oh + kh) * Wp
                    for kw in range(KW):
                        c = (kh * KW + kw) * Cin
                        patch1_ref[r:r + W1, c:c + Cin] = p[s + kw:s + kw + W1, :]
        y1 = jnp.dot(patch1_ref[...], w1_ref[...],
                     preferred_element_type=jnp.float32)          # (N*H1*W1, Cmid)
        y1 = _bn_relu(y1, gb1_ref[...])

        # ---- conv2: same scheme, reading the VMEM-resident y1.
        for n in range(N):
            for oh in range(H2):
                r = (n * H2 + oh) * W2
                for kh in range(KH):
                    s = (n * H1 + oh + kh) * W1
                    for kw in range(KW):
                        c = (kh * KW + kw) * Cmid
                        patch2_ref[r:r + W2, c:c + Cmid] = y1[s + kw:s + kw + W2, :]
        y2 = jnp.dot(patch2_ref[...], w2_ref[...],
                     preferred_element_type=jnp.float32)          # (N*H2*W2, Cout)
        o_ref[...] = _bn_relu(y2, gb2_ref[...])

    return kernel, (H1, W1, H2, W2)


@jax.jit
def down_along_forward(x_nchw, params):
    N, Cin, H, W = x_nchw.shape
    Hp, Wp = H // 2, W // 2
    Cmid = params["w1"].shape[-1]
    Cout = params["w2"].shape[-1]
    kernel, (H1, W1, H2, W2) = _make_fused_kernel(N, Cin, Cmid, Cout, Hp, Wp)
    K1, K2 = KH * KW * Cin, KH * KW * Cmid
    M1, M2 = N * H1 * W1, N * H2 * W2

    # Host-side layout plumbing only (one fused transpose/reshape, no compute):
    # x_win[a*2+b, n*Hp*Wp + oh*Wp + ow, c] = x[n, c, 2*oh+a, 2*ow+b]
    x_win = jnp.transpose(x_nchw, (0, 2, 3, 1)).reshape(N, Hp, 2, Wp, 2, Cin)
    x_win = jnp.transpose(x_win, (2, 4, 0, 1, 3, 5)).reshape(4, N * Hp * Wp, Cin)

    # Weight matrices: row order (kh, kw, cin) matches the im2col column order.
    w1m = params["w1"].reshape(K1, Cmid)
    w2m = params["w2"].reshape(K2, Cout)
    # BN affine packed: row 0 = gamma, row 1 = beta (one operand per BatchNorm).
    gb1 = jnp.stack([params["g1"], params["be1"]], axis=0)        # (2, Cmid)
    gb2 = jnp.stack([params["g2"], params["be2"]], axis=0)        # (2, Cout)

    vmem = pl.BlockSpec(memory_space=pltpu.MemorySpace.VMEM)
    y = pl.pallas_call(
        kernel,
        out_shape=jax.ShapeDtypeStruct((M2, Cout), jnp.float32),
        in_specs=[vmem] * 5,
        out_specs=vmem,
        scratch_shapes=[pltpu.VMEM((M1, K1), jnp.float32),   # conv1 im2col patches
                        pltpu.VMEM((M2, K2), jnp.float32)],  # conv2 im2col patches
    )(x_win, w1m, w2m, gb1, gb2)

    # Tiny final result back to NCHW.
    return jnp.transpose(y.reshape(N, H2, W2, Cout), (0, 3, 1, 2))


def init_params(key, in_channels, out_channels):
    mid = out_channels  # DoubleConv default: mid_channels = out_channels
    k1, k2, k3, k4 = jax.random.split(key, 4)
    return {
        "w1": 0.1 * jax.random.normal(k1, (3, 3, in_channels, mid), jnp.float32),
        "b1": 0.1 * jax.random.normal(k2, (mid,), jnp.float32),   # cancelled by BN
        "g1": jnp.ones((mid,), jnp.float32),
        "be1": jnp.zeros((mid,), jnp.float32),
        "w2": 0.1 * jax.random.normal(k3, (3, 3, mid, out_channels), jnp.float32),
        "b2": 0.1 * jax.random.normal(k4, (out_channels,), jnp.float32),  # cancelled by BN
        "g2": jnp.ones((out_channels,), jnp.float32),
        "be2": jnp.zeros((out_channels,), jnp.float32),
    }


def _reference_forward(x, params):
    # Pure-JAX reference of the PyTorch module (NCHW), including the conv biases.
    def bn_relu(y, g, b):
        mean = y.mean(axis=(0, 2, 3), keepdims=True)
        var = jnp.square(y - mean).mean(axis=(0, 2, 3), keepdims=True)
        y = (y - mean) * lax.rsqrt(var + BN_EPS)
        return jnp.maximum(y * g.reshape(1, -1, 1, 1) + b.reshape(1, -1, 1, 1), 0.0)

    def conv(y, w_hwio, bias):
        w_oihw = jnp.transpose(w_hwio, (3, 2, 0, 1))
        out = lax.conv_general_dilated(
            y, w_oihw, window_strides=(1, 1), padding="VALID",
            dimension_numbers=("NCHW", "OIHW", "NCHW"),
            precision=lax.Precision.HIGHEST)
        return out + bias.reshape(1, -1, 1, 1)

    p = lax.reduce_window(x, -jnp.inf, lax.max, (1, 1, 2, 2), (1, 1, 2, 2), "VALID")
    y = bn_relu(conv(p, params["w1"], params["b1"]), params["g1"], params["be1"])
    y = bn_relu(conv(y, params["w2"], params["b2"]), params["g2"], params["be2"])
    return y


if __name__ == "__main__":
    in_channels, out_channels = 4, 8
    key = jax.random.PRNGKey(0)
    kx, kp = jax.random.split(key)
    x = jax.random.normal(kx, (2, in_channels, 16, 16), jnp.float32)  # NCHW like PyTorch
    params = init_params(kp, in_channels, out_channels)

    out = down_along_forward(x, params)
    out = jax.block_until_ready(out)
    assert out.shape == (2, out_channels, 4, 4), out.shape

    ref = _reference_forward(x, params)
    np.testing.assert_allclose(np.asarray(out), np.asarray(ref), atol=1e-3, rtol=1e-3)
    print("KERNEL_OK")
</pallas_src>

<mosaic_0001>
module attributes {stable_mosaic.version = 11 : i64} {
  func.func @kernel(%arg0: memref<4x128x4xf32, #tpu.memory_space<vmem>>, %arg1: memref<36x8xf32, #tpu.memory_space<vmem>>, %arg2: memref<72x8xf32, #tpu.memory_space<vmem>>, %arg3: memref<2x8xf32, #tpu.memory_space<vmem>>, %arg4: memref<2x8xf32, #tpu.memory_space<vmem>>, %arg5: memref<32x8xf32, #tpu.memory_space<vmem>>, %arg6: memref<72x36xf32, #tpu.memory_space<vmem>>, %arg7: memref<32x72xf32, #tpu.memory_space<vmem>>) attributes {dimension_semantics = [], scalar_prefetch = 0 : i64, scratch_operands = 2 : i64, tpu.core_type = #tpu.core_type<tc>} {
    %c0 = arith.constant 0 : index
    %c0_0 = arith.constant 0 : index
    %c0_1 = arith.constant 0 : index
    %0 = vector.load %arg0[%c0, %c0_0, %c0_1] : memref<4x128x4xf32, #tpu.memory_space<vmem>>, vector<1x128x4xf32>
    %1 = vector.shape_cast %0 : vector<1x128x4xf32> to vector<128x4xf32>
    %c1 = arith.constant 1 : index
    %c0_2 = arith.constant 0 : index
    %c0_3 = arith.constant 0 : index
    %2 = vector.load %arg0[%c1, %c0_2, %c0_3] : memref<4x128x4xf32, #tpu.memory_space<vmem>>, vector<1x128x4xf32>
    %3 = vector.shape_cast %2 : vector<1x128x4xf32> to vector<128x4xf32>
    %4 = arith.maximumf %1, %3 : vector<128x4xf32>
    %c2 = arith.constant 2 : index
    %c0_4 = arith.constant 0 : index
    %c0_5 = arith.constant 0 : index
    %5 = vector.load %arg0[%c2, %c0_4, %c0_5] : memref<4x128x4xf32, #tpu.memory_space<vmem>>, vector<1x128x4xf32>
    %6 = vector.shape_cast %5 : vector<1x128x4xf32> to vector<128x4xf32>
    %c3 = arith.constant 3 : index
    %c0_6 = arith.constant 0 : index
    %c0_7 = arith.constant 0 : index
    %7 = vector.load %arg0[%c3, %c0_6, %c0_7] : memref<4x128x4xf32, #tpu.memory_space<vmem>>, vector<1x128x4xf32>
    %8 = vector.shape_cast %7 : vector<1x128x4xf32> to vector<128x4xf32>
    %9 = arith.maximumf %6, %8 : vector<128x4xf32>
    %10 = arith.maximumf %4, %9 : vector<128x4xf32>
    %11 = vector.extract_strided_slice %10 {offsets = [0, 0], sizes = [6, 4], strides = [1, 1]} : vector<128x4xf32> to vector<6x4xf32>
    %c0_8 = arith.constant 0 : index
    %c0_9 = arith.constant 0 : index
    %12 = vector.load %arg6[%c0_8, %c0_9] : memref<72x36xf32, #tpu.memory_space<vmem>>, vector<6x4xf32>
    tpu.vector_store %arg6[%c0_8, %c0_9], %11 {strides = array<i32>} : memref<72x36xf32, #tpu.memory_space<vmem>>, vector<6x4xf32>,
    %13 = vector.extract_strided_slice %10 {offsets = [1, 0], sizes = [6, 4], strides = [1, 1]} : vector<128x4xf32> to vector<6x4xf32>
    %c0_10 = arith.constant 0 : index
    %c4 = arith.constant 4 : index
    %14 = vector.load %arg6[%c0_10, %c4] : memref<72x36xf32, #tpu.memory_space<vmem>>, vector<6x4xf32>
    tpu.vector_store %arg6[%c0_10, %c4], %13 {strides = array<i32>} : memref<72x36xf32, #tpu.memory_space<vmem>>, vector<6x4xf32>,
    %15 = vector.extract_strided_slice %10 {offsets = [2, 0], sizes = [6, 4], strides = [1, 1]} : vector<128x4xf32> to vector<6x4xf32>
    %c0_11 = arith.constant 0 : index
    %c8 = arith.constant 8 : index
    %16 = vector.load %arg6[%c0_11, %c8] : memref<72x36xf32, #tpu.memory_space<vmem>>, vector<6x4xf32>
    tpu.vector_store %arg6[%c0_11, %c8], %15 {strides = array<i32>} : memref<72x36xf32, #tpu.memory_space<vmem>>, vector<6x4xf32>,
    %17 = vector.extract_strided_slice %10 {offsets = [8, 0], sizes = [6, 4], strides = [1, 1]} : vector<128x4xf32> to vector<6x4xf32>
    %c0_12 = arith.constant 0 : index
    %c12 = arith.constant 12 : index
    %18 = vector.load %arg6[%c0_12, %c12] : memref<72x36xf32, #tpu.memory_space<vmem>>, vector<6x4xf32>
    tpu.vector_store %arg6[%c0_12, %c12], %17 {strides = array<i32>} : memref<72x36xf32, #tpu.memory_space<vmem>>, vector<6x4xf32>,
    %19 = vector.extract_strided_slice %10 {offsets = [9, 0], sizes = [6, 4], strides = [1, 1]} : vector<128x4xf32> to vector<6x4xf32>
    %c0_13 = arith.constant 0 : index
    %c16 = arith.constant 16 : index
    %20 = vector.load %arg6[%c0_13, %c16] : memref<72x36xf32, #tpu.memory_space<vmem>>, vector<6x4xf32>
    tpu.vector_store %arg6[%c0_13, %c16], %19 {strides = array<i32>} : memref<72x36xf32, #tpu.memory_space<vmem>>, vector<6x4xf32>,
    %21 = vector.extract_strided_slice %10 {offsets = [10, 0], sizes = [6, 4], strides = [1, 1]} : vector<128x4xf32> to vector<6x4xf32>
    %c0_14 = arith.constant 0 : index
    %c20 = arith.constant 20 : index
    %22 = vector.load %arg6[%c0_14, %c20] : memref<72x36xf32, #tpu.memory_space<vmem>>, vector<6x4xf32>
    tpu.vector_store %arg6[%c0_14, %c20], %21 {strides = array<i32>} : memref<72x36xf32, #tpu.memory_space<vmem>>, vector<6x4xf32>,
    %23 = vector.extract_strided_slice %10 {offsets = [16, 0], sizes = [6, 4], strides = [1, 1]} : vector<128x4xf32> to vector<6x4xf32>
    %c0_15 = arith.constant 0 : index
    %c24 = arith.constant 24 : index
    %24 = vector.load %arg6[%c0_15, %c24] : memref<72x36xf32, #tpu.memory_space<vmem>>, vector<6x4xf32>
    tpu.vector_store %arg6[%c0_15, %c24], %23 {strides = array<i32>} : memref<72x36xf32, #tpu.memory_space<vmem>>, vector<6x4xf32>,
    %25 = vector.extract_strided_slice %10 {offsets = [17, 0], sizes = [6, 4], strides = [1, 1]} : vector<128x4xf32> to vector<6x4xf32>
    %c0_16 = arith.constant 0 : index
    %c28 = arith.constant 28 : index
    %26 = vector.load %arg6[%c0_16, %c28] : memref<72x36xf32, #tpu.memory_space<vmem>>, vector<6x4xf32>
    tpu.vector_store %arg6[%c0_16, %c28], %25 {strides = array<i32>} : memref<72x36xf32, #tpu.memory_space<vmem>>, vector<6x4xf32>,
    %27 = vector.extract_strided_slice %10 {offsets = [18, 0], sizes = [6, 4], strides = [1, 1]} : vector<128x4xf32> to vector<6x4xf32>
    %c0_17 = arith.constant 0 : index
    %c32 = arith.constant 32 : index
    %28 = vector.load %arg6[%c0_17, %c32] : memref<72x36xf32, #tpu.memory_space<vmem>>, vector<6x4xf32>
    tpu.vector_store %arg6[%c0_17, %c32], %27 {strides = array<i32>} : memref<72x36xf32, #tpu.memory_space<vmem>>, vector<6x4xf32>,
    %29 = vector.extract_strided_slice %10 {offsets = [8, 0], sizes = [6, 4], strides = [1, 1]} : vector<128x4xf32> to vector<6x4xf32>
    %c6 = arith.constant 6 : index
    %c0_18 = arith.constant 0 : index
    %30 = vector.load %arg6[%c6, %c0_18] : memref<72x36xf32, #tpu.memory_space<vmem>>, vector<6x4xf32>
    tpu.vector_store %arg6[%c6, %c0_18], %29 {strides = array<i32>} : memref<72x36xf32, #tpu.memory_space<vmem>>, vector<6x4xf32>,
    %31 = vector.extract_strided_slice %10 {offsets = [9, 0], sizes = [6, 4], strides = [1, 1]} : vector<128x4xf32> to vector<6x4xf32>
    %c6_19 = arith.constant 6 : index
    %c4_20 = arith.constant 4 : index
    %32 = vector.load %arg6[%c6_19, %c4_20] : memref<72x36xf32, #tpu.memory_space<vmem>>, vector<6x4xf32>
    tpu.vector_store %arg6[%c6_19, %c4_20], %31 {strides = array<i32>} : memref<72x36xf32, #tpu.memory_space<vmem>>, vector<6x4xf32>,
    %33 = vector.extract_strided_slice %10 {offsets = [10, 0], sizes = [6, 4], strides = [1, 1]} : vector<128x4xf32> to vector<6x4xf32>
    %c6_21 = arith.constant 6 : index
    %c8_22 = arith.constant 8 : index
    %34 = vector.load %arg6[%c6_21, %c8_22] : memref<72x36xf32, #tpu.memory_space<vmem>>, vector<6x4xf32>
    tpu.vector_store %arg6[%c6_21, %c8_22], %33 {strides = array<i32>} : memref<72x36xf32, #tpu.memory_space<vmem>>, vector<6x4xf32>,
    %35 = vector.extract_strided_slice %10 {offsets = [16, 0], sizes = [6, 4], strides = [1, 1]} : vector<128x4xf32> to vector<6x4xf32>
    %c6_23 = arith.constant 6 : index
    %c12_24 = arith.constant 12 : index
    %36 = vector.load %arg6[%c6_23, %c12_24] : memref<72x36xf32, #tpu.memory_space<vmem>>, vector<6x4xf32>
    tpu.vector_store %arg6[%c6_23, %c12_24], %35 {strides = array<i32>} : memref<72x36xf32, #tpu.memory_space<vmem>>, vector<6x4xf32>,
    %37 = vector.extract_strided_slice %10 {offsets = [17, 0], sizes = [6, 4], strides = [1, 1]} : vector<128x4xf32> to vector<6x4xf32>
    %c6_25 = arith.constant 6 : index
    %c16_26 = arith.constant 16 : index
    %38 = vector.load %arg6[%c6_25, %c16_26] : memref<72x36xf32, #tpu.memory_space<vmem>>, vector<6x4xf32>
    tpu.vector_store %arg6[%c6_25, %c16_26], %37 {strides = array<i32>} : memref<72x36xf32, #tpu.memory_space<vmem>>, vector<6x4xf32>,
    %39 = vector.extract_strided_slice %10 {offsets = [18, 0], sizes = [6, 4], strides = [1, 1]} : vector<128x4xf32> to vector<6x4xf32>
    %c6_27 = arith.constant 6 : index
    %c20_28 = arith.constant 20 : index
    %40 = vector.load %arg6[%c6_27, %c20_28] : memref<72x36xf32, #tpu.memory_space<vmem>>, vector<6x4xf32>
    tpu.vector_store %arg6[%c6_27, %c20_28], %39 {strides = array<i32>} : memref<72x36xf32, #tpu.memory_space<vmem>>, vector<6x4xf32>,
    %41 = vector.extract_strided_slice %10 {offsets = [24, 0], sizes = [6, 4], strides = [1, 1]} : vector<128x4xf32> to vector<6x4xf32>
    %c6_29 = arith.constant 6 : index
    %c24_30 = arith.constant 24 : index
    %42 = vector.load %arg6[%c6_29, %c24_30] : memref<72x36xf32, #tpu.memory_space<vmem>>, vector<6x4xf32>
    tpu.vector_store %arg6[%c6_29, %c24_30], %41 {strides = array<i32>} : memref<72x36xf32, #tpu.memory_space<vmem>>, vector<6x4xf32>,
    %43 = vector.extract_strided_slice %10 {offsets = [25, 0], sizes = [6, 4], strides = [1, 1]} : vector<128x4xf32> to vector<6x4xf32>
    %c6_31 = arith.constant 6 : index
    %c28_32 = arith.constant 28 : index
    %44 = vector.load %arg6[%c6_31, %c28_32] : memref<72x36xf32, #tpu.memory_space<vmem>>, vector<6x4xf32>
    tpu.vector_store %arg6[%c6_31, %c28_32], %43 {strides = array<i32>} : memref<72x36xf32, #tpu.memory_space<vmem>>, vector<6x4xf32>,
    %45 = vector.extract_strided_slice %10 {offsets = [26, 0], sizes = [6, 4], strides = [1, 1]} : vector<128x4xf32> to vector<6x4xf32>
    %c6_33 = arith.constant 6 : index
    %c32_34 = arith.constant 32 : index
    %46 = vector.load %arg6[%c6_33, %c32_34] : memref<72x36xf32, #tpu.memory_space<vmem>>, vector<6x4xf32>
    tpu.vector_store %arg6[%c6_33, %c32_34], %45 {strides = array<i32>} : memref<72x36xf32, #tpu.memory_space<vmem>>, vector<6x4xf32>,
    %47 = vector.extract_strided_slice %10 {offsets = [16, 0], sizes = [6, 4], strides = [1, 1]} : vector<128x4xf32> to vector<6x4xf32>
    %c12_35 = arith.constant 12 : index
    %c0_36 = arith.constant 0 : index
    %48 = vector.load %arg6[%c12_35, %c0_36] : memref<72x36xf32, #tpu.memory_space<vmem>>, vector<6x4xf32>
    tpu.vector_store %arg6[%c12_35, %c0_36], %47 {strides = array<i32>} : memref<72x36xf32, #tpu.memory_space<vmem>>, vector<6x4xf32>,
    %49 = vector.extract_strided_slice %10 {offsets = [17, 0], sizes = [6, 4], strides = [1, 1]} : vector<128x4xf32> to vector<6x4xf32>
    %c12_37 = arith.constant 12 : index
    %c4_38 = arith.constant 4 : index
    %50 = vector.load %arg6[%c12_37, %c4_38] : memref<72x36xf32, #tpu.memory_space<vmem>>, vector<6x4xf32>
    tpu.vector_store %arg6[%c12_37, %c4_38], %49 {strides = array<i32>} : memref<72x36xf32, #tpu.memory_space<vmem>>, vector<6x4xf32>,
    %51 = vector.extract_strided_slice %10 {offsets = [18, 0], sizes = [6, 4], strides = [1, 1]} : vector<128x4xf32> to vector<6x4xf32>
    %c12_39 = arith.constant 12 : index
    %c8_40 = arith.constant 8 : index
    %52 = vector.load %arg6[%c12_39, %c8_40] : memref<72x36xf32, #tpu.memory_space<vmem>>, vector<6x4xf32>
    tpu.vector_store %arg6[%c12_39, %c8_40], %51 {strides = array<i32>} : memref<72x36xf32, #tpu.memory_space<vmem>>, vector<6x4xf32>,
    %53 = vector.extract_strided_slice %10 {offsets = [24, 0], sizes = [6, 4], strides = [1, 1]} : vector<128x4xf32> to vector<6x4xf32>
    %c12_41 = arith.constant 12 : index
    %c12_42 = arith.constant 12 : index
    %54 = vector.load %arg6[%c12_41, %c12_42] : memref<72x36xf32, #tpu.memory_space<vmem>>, vector<6x4xf32>
    tpu.vector_store %arg6[%c12_41, %c12_42], %53 {strides = array<i32>} : memref<72x36xf32, #tpu.memory_space<vmem>>, vector<6x4xf32>,
    %55 = vector.extract_strided_slice %10 {offsets = [25, 0], sizes = [6, 4], strides = [1, 1]} : vector<128x4xf32> to vector<6x4xf32>
    %c12_43 = arith.constant 12 : index
    %c16_44 = arith.constant 16 : index
    %56 = vector.load %arg6[%c12_43, %c16_44] : memref<72x36xf32, #tpu.memory_space<vmem>>, vector<6x4xf32>
    tpu.vector_store %arg6[%c12_43, %c16_44], %55 {strides = array<i32>} : memref<72x36xf32, #tpu.memory_space<vmem>>, vector<6x4xf32>,
    %57 = vector.extract_strided_slice %10 {offsets = [26, 0], sizes = [6, 4], strides = [1, 1]} : vector<128x4xf32> to vector<6x4xf32>
    %c12_45 = arith.constant 12 : index
    %c20_46 = arith.constant 20 : index
    %58 = vector.load %arg6[%c12_45, %c20_46] : memref<72x36xf32, #tpu.memory_space<vmem>>, vector<6x4xf32>
    tpu.vector_store %arg6[%c12_45, %c20_46], %57 {strides = array<i32>} : memref<72x36xf32, #tpu.memory_space<vmem>>, vector<6x4xf32>,
    %59 = vector.extract_strided_slice %10 {offsets = [32, 0], sizes = [6, 4], strides = [1, 1]} : vector<128x4xf32> to vector<6x4xf32>
    %c12_47 = arith.constant 12 : index
    %c24_48 = arith.constant 24 : index
    %60 = vector.load %arg6[%c12_47, %c24_48] : memref<72x36xf32, #tpu.memory_space<vmem>>, vector<6x4xf32>
    tpu.vector_store %arg6[%c12_47, %c24_48], %59 {strides = array<i32>} : memref<72x36xf32, #tpu.memory_space<vmem>>, vector<6x4xf32>,
    %61 = vector.extract_strided_slice %10 {offsets = [33, 0], sizes = [6, 4], strides = [1, 1]} : vector<128x4xf32> to vector<6x4xf32>
    %c12_49 = arith.constant 12 : index
    %c28_50 = arith.constant 28 : index
    %62 = vector.load %arg6[%c12_49, %c28_50] : memref<72x36xf32, #tpu.memory_space<vmem>>, vector<6x4xf32>
    tpu.vector_store %arg6[%c12_49, %c28_50], %61 {strides = array<i32>} : memref<72x36xf32, #tpu.memory_space<vmem>>, vector<6x4xf32>,
    %63 = vector.extract_strided_slice %10 {offsets = [34, 0], sizes = [6, 4], strides = [1, 1]} : vector<128x4xf32> to vector<6x4xf32>
    %c12_51 = arith.constant 12 : index
    %c32_52 = arith.constant 32 : index
    %64 = vector.load %arg6[%c12_51, %c32_52] : memref<72x36xf32, #tpu.memory_space<vmem>>, vector<6x4xf32>
    tpu.vector_store %arg6[%c12_51, %c32_52], %63 {strides = array<i32>} : memref<72x36xf32, #tpu.memory_space<vmem>>, vector<6x4xf32>,
    %65 = vector.extract_strided_slice %10 {offsets = [24, 0], sizes = [6, 4], strides = [1, 1]} : vector<128x4xf32> to vector<6x4xf32>
    %c18 = arith.constant 18 : index
    %c0_53 = arith.constant 0 : index
    %66 = vector.load %arg6[%c18, %c0_53] : memref<72x36xf32, #tpu.memory_space<vmem>>, vector<6x4xf32>
    tpu.vector_store %arg6[%c18, %c0_53], %65 {strides = array<i32>} : memref<72x36xf32, #tpu.memory_space<vmem>>, vector<6x4xf32>,
    %67 = vector.extract_strided_slice %10 {offsets = [25, 0], sizes = [6, 4], strides = [1, 1]} : vector<128x4xf32> to vector<6x4xf32>
    %c18_54 = arith.constant 18 : index
    %c4_55 = arith.constant 4 : index
    %68 = vector.load %arg6[%c18_54, %c4_55] : memref<72x36xf32, #tpu.memory_space<vmem>>, vector<6x4xf32>
    tpu.vector_store %arg6[%c18_54, %c4_55], %67 {strides = array<i32>} : memref<72x36xf32, #tpu.memory_space<vmem>>, vector<6x4xf32>,
    %69 = vector.extract_strided_slice %10 {offsets = [26, 0], sizes = [6, 4], strides = [1, 1]} : vector<128x4xf32> to vector<6x4xf32>
    %c18_56 = arith.constant 18 : index
    %c8_57 = arith.constant 8 : index
    %70 = vector.load %arg6[%c18_56, %c8_57] : memref<72x36xf32, #tpu.memory_space<vmem>>, vector<6x4xf32>
    tpu.vector_store %arg6[%c18_56, %c8_57], %69 {strides = array<i32>} : memref<72x36xf32, #tpu.memory_space<vmem>>, vector<6x4xf32>,
    %71 = vector.extract_strided_slice %10 {offsets = [32, 0], sizes = [6, 4], strides = [1, 1]} : vector<128x4xf32> to vector<6x4xf32>
    %c18_58 = arith.constant 18 : index
    %c12_59 = arith.constant 12 : index
    %72 = vector.load %arg6[%c18_58, %c12_59] : memref<72x36xf32, #tpu.memory_space<vmem>>, vector<6x4xf32>
    tpu.vector_store %arg6[%c18_58, %c12_59], %71 {strides = array<i32>} : memref<72x36xf32, #tpu.memory_space<vmem>>, vector<6x4xf32>,
    %73 = vector.extract_strided_slice %10 {offsets = [33, 0], sizes = [6, 4], strides = [1, 1]} : vector<128x4xf32> to vector<6x4xf32>
    %c18_60 = arith.constant 18 : index
    %c16_61 = arith.constant 16 : index
    %74 = vector.load %arg6[%c18_60, %c16_61] : memref<72x36xf32, #tpu.memory_space<vmem>>, vector<6x4xf32>
    tpu.vector_store %arg6[%c18_60, %c16_61], %73 {strides = array<i32>} : memref<72x36xf32, #tpu.memory_space<vmem>>, vector<6x4xf32>,
    %75 = vector.extract_strided_slice %10 {offsets = [34, 0], sizes = [6, 4], strides = [1, 1]} : vector<128x4xf32> to vector<6x4xf32>
    %c18_62 = arith.constant 18 : index
    %c20_63 = arith.constant 20 : index
    %76 = vector.load %arg6[%c18_62, %c20_63] : memref<72x36xf32, #tpu.memory_space<vmem>>, vector<6x4xf32>
    tpu.vector_store %arg6[%c18_62, %c20_63], %75 {strides = array<i32>} : memref<72x36xf32, #tpu.memory_space<vmem>>, vector<6x4xf32>,
    %77 = vector.extract_strided_slice %10 {offsets = [40, 0], sizes = [6, 4], strides = [1, 1]} : vector<128x4xf32> to vector<6x4xf32>
    %c18_64 = arith.constant 18 : index
    %c24_65 = arith.constant 24 : index
    %78 = vector.load %arg6[%c18_64, %c24_65] : memref<72x36xf32, #tpu.memory_space<vmem>>, vector<6x4xf32>
    tpu.vector_store %arg6[%c18_64, %c24_65], %77 {strides = array<i32>} : memref<72x36xf32, #tpu.memory_space<vmem>>, vector<6x4xf32>,
    %79 = vector.extract_strided_slice %10 {offsets = [41, 0], sizes = [6, 4], strides = [1, 1]} : vector<128x4xf32> to vector<6x4xf32>
    %c18_66 = arith.constant 18 : index
    %c28_67 = arith.constant 28 : index
    %80 = vector.load %arg6[%c18_66, %c28_67] : memref<72x36xf32, #tpu.memory_space<vmem>>, vector<6x4xf32>
    tpu.vector_store %arg6[%c18_66, %c28_67], %79 {strides = array<i32>} : memref<72x36xf32, #tpu.memory_space<vmem>>, vector<6x4xf32>,
    %81 = vector.extract_strided_slice %10 {offsets = [42, 0], sizes = [6, 4], strides = [1, 1]} : vector<128x4xf32> to vector<6x4xf32>
    %c18_68 = arith.constant 18 : index
    %c32_69 = arith.constant 32 : index
    %82 = vector.load %arg6[%c18_68, %c32_69] : memref<72x36xf32, #tpu.memory_space<vmem>>, vector<6x4xf32>
    tpu.vector_store %arg6[%c18_68, %c32_69], %81 {strides = array<i32>} : memref<72x36xf32, #tpu.memory_space<vmem>>, vector<6x4xf32>,
    %83 = vector.extract_strided_slice %10 {offsets = [32, 0], sizes = [6, 4], strides = [1, 1]} : vector<128x4xf32> to vector<6x4xf32>
    %c24_70 = arith.constant 24 : index
    %c0_71 = arith.constant 0 : index
    %84 = vector.load %arg6[%c24_70, %c0_71] : memref<72x36xf32, #tpu.memory_space<vmem>>, vector<6x4xf32>
    tpu.vector_store %arg6[%c24_70, %c0_71], %83 {strides = array<i32>} : memref<72x36xf32, #tpu.memory_space<vmem>>, vector<6x4xf32>,
    %85 = vector.extract_strided_slice %10 {offsets = [33, 0], sizes = [6, 4], strides = [1, 1]} : vector<128x4xf32> to vector<6x4xf32>
    %c24_72 = arith.constant 24 : index
    %c4_73 = arith.constant 4 : index
    %86 = vector.load %arg6[%c24_72, %c4_73] : memref<72x36xf32, #tpu.memory_space<vmem>>, vector<6x4xf32>
    tpu.vector_store %arg6[%c24_72, %c4_73], %85 {strides = array<i32>} : memref<72x36xf32, #tpu.memory_space<vmem>>, vector<6x4xf32>,
    %87 = vector.extract_strided_slice %10 {offsets = [34, 0], sizes = [6, 4], strides = [1, 1]} : vector<128x4xf32> to vector<6x4xf32>
    %c24_74 = arith.constant 24 : index
    %c8_75 = arith.constant 8 : index
    %88 = vector.load %arg6[%c24_74, %c8_75] : memref<72x36xf32, #tpu.memory_space<vmem>>, vector<6x4xf32>
    tpu.vector_store %arg6[%c24_74, %c8_75], %87 {strides = array<i32>} : memref<72x36xf32, #tpu.memory_space<vmem>>, vector<6x4xf32>,
    %89 = vector.extract_strided_slice %10 {offsets = [40, 0], sizes = [6, 4], strides = [1, 1]} : vector<128x4xf32> to vector<6x4xf32>
    %c24_76 = arith.constant 24 : index
    %c12_77 = arith.constant 12 : index
    %90 = vector.load %arg6[%c24_76, %c12_77] : memref<72x36xf32, #tpu.memory_space<vmem>>, vector<6x4xf32>
    tpu.vector_store %arg6[%c24_76, %c12_77], %89 {strides = array<i32>} : memref<72x36xf32, #tpu.memory_space<vmem>>, vector<6x4xf32>,
    %91 = vector.extract_strided_slice %10 {offsets = [41, 0], sizes = [6, 4], strides = [1, 1]} : vector<128x4xf32> to vector<6x4xf32>
    %c24_78 = arith.constant 24 : index
    %c16_79 = arith.constant 16 : index
    %92 = vector.load %arg6[%c24_78, %c16_79] : memref<72x36xf32, #tpu.memory_space<vmem>>, vector<6x4xf32>
    tpu.vector_store %arg6[%c24_78, %c16_79], %91 {strides = array<i32>} : memref<72x36xf32, #tpu.memory_space<vmem>>, vector<6x4xf32>,
    %93 = vector.extract_strided_slice %10 {offsets = [42, 0], sizes = [6, 4], strides = [1, 1]} : vector<128x4xf32> to vector<6x4xf32>
    %c24_80 = arith.constant 24 : index
    %c20_81 = arith.constant 20 : index
    %94 = vector.load %arg6[%c24_80, %c20_81] : memref<72x36xf32, #tpu.memory_space<vmem>>, vector<6x4xf32>
    tpu.vector_store %arg6[%c24_80, %c20_81], %93 {strides = array<i32>} : memref<72x36xf32, #tpu.memory_space<vmem>>, vector<6x4xf32>,
    %95 = vector.extract_strided_slice %10 {offsets = [48, 0], sizes = [6, 4], strides = [1, 1]} : vector<128x4xf32> to vector<6x4xf32>
    %c24_82 = arith.constant 24 : index
    %c24_83 = arith.constant 24 : index
    %96 = vector.load %arg6[%c24_82, %c24_83] : memref<72x36xf32, #tpu.memory_space<vmem>>, vector<6x4xf32>
    tpu.vector_store %arg6[%c24_82, %c24_83], %95 {strides = array<i32>} : memref<72x36xf32, #tpu.memory_space<vmem>>, vector<6x4xf32>,
    %97 = vector.extract_strided_slice %10 {offsets = [49, 0], sizes = [6, 4], strides = [1, 1]} : vector<128x4xf32> to vector<6x4xf32>
    %c24_84 = arith.constant 24 : index
    %c28_85 = arith.constant 28 : index
    %98 = vector.load %arg6[%c24_84, %c28_85] : memref<72x36xf32, #tpu.memory_space<vmem>>, vector<6x4xf32>
    tpu.vector_store %arg6[%c24_84, %c28_85], %97 {strides = array<i32>} : memref<72x36xf32, #tpu.memory_space<vmem>>, vector<6x4xf32>,
    %99 = vector.extract_strided_slice %10 {offsets = [50, 0], sizes = [6, 4], strides = [1, 1]} : vector<128x4xf32> to vector<6x4xf32>
    %c24_86 = arith.constant 24 : index
    %c32_87 = arith.constant 32 : index
    %100 = vector.load %arg6[%c24_86, %c32_87] : memref<72x36xf32, #tpu.memory_space<vmem>>, vector<6x4xf32>
    tpu.vector_store %arg6[%c24_86, %c32_87], %99 {strides = array<i32>} : memref<72x36xf32, #tpu.memory_space<vmem>>, vector<6x4xf32>,
    %101 = vector.extract_strided_slice %10 {offsets = [40, 0], sizes = [6, 4], strides = [1, 1]} : vector<128x4xf32> to vector<6x4xf32>
    %c30 = arith.constant 30 : index
    %c0_88 = arith.constant 0 : index
    %102 = vector.load %arg6[%c30, %c0_88] : memref<72x36xf32, #tpu.memory_space<vmem>>, vector<6x4xf32>
    tpu.vector_store %arg6[%c30, %c0_88], %101 {strides = array<i32>} : memref<72x36xf32, #tpu.memory_space<vmem>>, vector<6x4xf32>,
    %103 = vector.extract_strided_slice %10 {offsets = [41, 0], sizes = [6, 4], strides = [1, 1]} : vector<128x4xf32> to vector<6x4xf32>
    %c30_89 = arith.constant 30 : index
    %c4_90 = arith.constant 4 : index
    %104 = vector.load %arg6[%c30_89, %c4_90] : memref<72x36xf32, #tpu.memory_space<vmem>>, vector<6x4xf32>
    tpu.vector_store %arg6[%c30_89, %c4_90], %103 {strides = array<i32>} : memref<72x36xf32, #tpu.memory_space<vmem>>, vector<6x4xf32>,
    %105 = vector.extract_strided_slice %10 {offsets = [42, 0], sizes = [6, 4], strides = [1, 1]} : vector<128x4xf32> to vector<6x4xf32>
    %c30_91 = arith.constant 30 : index
    %c8_92 = arith.constant 8 : index
    %106 = vector.load %arg6[%c30_91, %c8_92] : memref<72x36xf32, #tpu.memory_space<vmem>>, vector<6x4xf32>
    tpu.vector_store %arg6[%c30_91, %c8_92], %105 {strides = array<i32>} : memref<72x36xf32, #tpu.memory_space<vmem>>, vector<6x4xf32>,
    %107 = vector.extract_strided_slice %10 {offsets = [48, 0], sizes = [6, 4], strides = [1, 1]} : vector<128x4xf32> to vector<6x4xf32>
    %c30_93 = arith.constant 30 : index
    %c12_94 = arith.constant 12 : index
    %108 = vector.load %arg6[%c30_93, %c12_94] : memref<72x36xf32, #tpu.memory_space<vmem>>, vector<6x4xf32>
    tpu.vector_store %arg6[%c30_93, %c12_94], %107 {strides = array<i32>} : memref<72x36xf32, #tpu.memory_space<vmem>>, vector<6x4xf32>,
    %109 = vector.extract_strided_slice %10 {offsets = [49, 0], sizes = [6, 4], strides = [1, 1]} : vector<128x4xf32> to vector<6x4xf32>
    %c30_95 = arith.constant 30 : index
    %c16_96 = arith.constant 16 : index
    %110 = vector.load %arg6[%c30_95, %c16_96] : memref<72x36xf32, #tpu.memory_space<vmem>>, vector<6x4xf32>
    tpu.vector_store %arg6[%c30_95, %c16_96], %109 {strides = array<i32>} : memref<72x36xf32, #tpu.memory_space<vmem>>, vector<6x4xf32>,
    %111 = vector.extract_strided_slice %10 {offsets = [50, 0], sizes = [6, 4], strides = [1, 1]} : vector<128x4xf32> to vector<6x4xf32>
    %c30_97 = arith.constant 30 : index
    %c20_98 = arith.constant 20 : index
    %112 = vector.load %arg6[%c30_97, %c20_98] : memref<72x36xf32, #tpu.memory_space<vmem>>, vector<6x4xf32>
    tpu.vector_store %arg6[%c30_97, %c20_98], %111 {strides = array<i32>} : memref<72x36xf32, #tpu.memory_space<vmem>>, vector<6x4xf32>,
    %113 = vector.extract_strided_slice %10 {offsets = [56, 0], sizes = [6, 4], strides = [1, 1]} : vector<128x4xf32> to vector<6x4xf32>
    %c30_99 = arith.constant 30 : index
    %c24_100 = arith.constant 24 : index
    %114 = vector.load %arg6[%c30_99, %c24_100] : memref<72x36xf32, #tpu.memory_space<vmem>>, vector<6x4xf32>
    tpu.vector_store %arg6[%c30_99, %c24_100], %113 {strides = array<i32>} : memref<72x36xf32, #tpu.memory_space<vmem>>, vector<6x4xf32>,
    %115 = vector.extract_strided_slice %10 {offsets = [57, 0], sizes = [6, 4], strides = [1, 1]} : vector<128x4xf32> to vector<6x4xf32>
    %c30_101 = arith.constant 30 : index
    %c28_102 = arith.constant 28 : index
    %116 = vector.load %arg6[%c30_101, %c28_102] : memref<72x36xf32, #tpu.memory_space<vmem>>, vector<6x4xf32>
    tpu.vector_store %arg6[%c30_101, %c28_102], %115 {strides = array<i32>} : memref<72x36xf32, #tpu.memory_space<vmem>>, vector<6x4xf32>,
    %117 = vector.extract_strided_slice %10 {offsets = [58, 0], sizes = [6, 4], strides = [1, 1]} : vector<128x4xf32> to vector<6x4xf32>
    %c30_103 = arith.constant 30 : index
    %c32_104 = arith.constant 32 : index
    %118 = vector.load %arg6[%c30_103, %c32_104] : memref<72x36xf32, #tpu.memory_space<vmem>>, vector<6x4xf32>
    tpu.vector_store %arg6[%c30_103, %c32_104], %117 {strides = array<i32>} : memref<72x36xf32, #tpu.memory_space<vmem>>, vector<6x4xf32>,
    %119 = vector.extract_strided_slice %10 {offsets = [64, 0], sizes = [6, 4], strides = [1, 1]} : vector<128x4xf32> to vector<6x4xf32>
    %c36 = arith.constant 36 : index
    %c0_105 = arith.constant 0 : index
    %120 = vector.load %arg6[%c36, %c0_105] : memref<72x36xf32, #tpu.memory_space<vmem>>, vector<6x4xf32>
    tpu.vector_store %arg6[%c36, %c0_105], %119 {strides = array<i32>} : memref<72x36xf32, #tpu.memory_space<vmem>>, vector<6x4xf32>,
    %121 = vector.extract_strided_slice %10 {offsets = [65, 0], sizes = [6, 4], strides = [1, 1]} : vector<128x4xf32> to vector<6x4xf32>
    %c36_106 = arith.constant 36 : index
    %c4_107 = arith.constant 4 : index
    %122 = vector.load %arg6[%c36_106, %c4_107] : memref<72x36xf32, #tpu.memory_space<vmem>>, vector<6x4xf32>
    tpu.vector_store %arg6[%c36_106, %c4_107], %121 {strides = array<i32>} : memref<72x36xf32, #tpu.memory_space<vmem>>, vector<6x4xf32>,
    %123 = vector.extract_strided_slice %10 {offsets = [66, 0], sizes = [6, 4], strides = [1, 1]} : vector<128x4xf32> to vector<6x4xf32>
    %c36_108 = arith.constant 36 : index
    %c8_109 = arith.constant 8 : index
    %124 = vector.load %arg6[%c36_108, %c8_109] : memref<72x36xf32, #tpu.memory_space<vmem>>, vector<6x4xf32>
    tpu.vector_store %arg6[%c36_108, %c8_109], %123 {strides = array<i32>} : memref<72x36xf32, #tpu.memory_space<vmem>>, vector<6x4xf32>,
    %125 = vector.extract_strided_slice %10 {offsets = [72, 0], sizes = [6, 4], strides = [1, 1]} : vector<128x4xf32> to vector<6x4xf32>
    %c36_110 = arith.constant 36 : index
    %c12_111 = arith.constant 12 : index
    %126 = vector.load %arg6[%c36_110, %c12_111] : memref<72x36xf32, #tpu.memory_space<vmem>>, vector<6x4xf32>
    tpu.vector_store %arg6[%c36_110, %c12_111], %125 {strides = array<i32>} : memref<72x36xf32, #tpu.memory_space<vmem>>, vector<6x4xf32>,
    %127 = vector.extract_strided_slice %10 {offsets = [73, 0], sizes = [6, 4], strides = [1, 1]} : vector<128x4xf32> to vector<6x4xf32>
    %c36_112 = arith.constant 36 : index
    %c16_113 = arith.constant 16 : index
    %128 = vector.load %arg6[%c36_112, %c16_113] : memref<72x36xf32, #tpu.memory_space<vmem>>, vector<6x4xf32>
    tpu.vector_store %arg6[%c36_112, %c16_113], %127 {strides = array<i32>} : memref<72x36xf32, #tpu.memory_space<vmem>>, vector<6x4xf32>,
    %129 = vector.extract_strided_slice %10 {offsets = [74, 0], sizes = [6, 4], strides = [1, 1]} : vector<128x4xf32> to vector<6x4xf32>
    %c36_114 = arith.constant 36 : index
    %c20_115 = arith.constant 20 : index
    %130 = vector.load %arg6[%c36_114, %c20_115] : memref<72x36xf32, #tpu.memory_space<vmem>>, vector<6x4xf32>
    tpu.vector_store %arg6[%c36_114, %c20_115], %129 {strides = array<i32>} : memref<72x36xf32, #tpu.memory_space<vmem>>, vector<6x4xf32>,
    %131 = vector.extract_strided_slice %10 {offsets = [80, 0], sizes = [6, 4], strides = [1, 1]} : vector<128x4xf32> to vector<6x4xf32>
    %c36_116 = arith.constant 36 : index
    %c24_117 = arith.constant 24 : index
    %132 = vector.load %arg6[%c36_116, %c24_117] : memref<72x36xf32, #tpu.memory_space<vmem>>, vector<6x4xf32>
    tpu.vector_store %arg6[%c36_116, %c24_117], %131 {strides = array<i32>} : memref<72x36xf32, #tpu.memory_space<vmem>>, vector<6x4xf32>,
    %133 = vector.extract_strided_slice %10 {offsets = [81, 0], sizes = [6, 4], strides = [1, 1]} : vector<128x4xf32> to vector<6x4xf32>
    %c36_118 = arith.constant 36 : index
    %c28_119 = arith.constant 28 : index
    %134 = vector.load %arg6[%c36_118, %c28_119] : memref<72x36xf32, #tpu.memory_space<vmem>>, vector<6x4xf32>
    tpu.vector_store %arg6[%c36_118, %c28_119], %133 {strides = array<i32>} : memref<72x36xf32, #tpu.memory_space<vmem>>, vector<6x4xf32>,
    %135 = vector.extract_strided_slice %10 {offsets = [82, 0], sizes = [6, 4], strides = [1, 1]} : vector<128x4xf32> to vector<6x4xf32>
    %c36_120 = arith.constant 36 : index
    %c32_121 = arith.constant 32 : index
    %136 = vector.load %arg6[%c36_120, %c32_121] : memref<72x36xf32, #tpu.memory_space<vmem>>, vector<6x4xf32>
    tpu.vector_store %arg6[%c36_120, %c32_121], %135 {strides = array<i32>} : memref<72x36xf32, #tpu.memory_space<vmem>>, vector<6x4xf32>,
    %137 = vector.extract_strided_slice %10 {offsets = [72, 0], sizes = [6, 4], strides = [1, 1]} : vector<128x4xf32> to vector<6x4xf32>
    %c42 = arith.constant 42 : index
    %c0_122 = arith.constant 0 : index
    %138 = vector.load %arg6[%c42, %c0_122] : memref<72x36xf32, #tpu.memory_space<vmem>>, vector<6x4xf32>
    tpu.vector_store %arg6[%c42, %c0_122], %137 {strides = array<i32>} : memref<72x36xf32, #tpu.memory_space<vmem>>, vector<6x4xf32>,
    %139 = vector.extract_strided_slice %10 {offsets = [73, 0], sizes = [6, 4], strides = [1, 1]} : vector<128x4xf32> to vector<6x4xf32>
    %c42_123 = arith.constant 42 : index
    %c4_124 = arith.constant 4 : index
    %140 = vector.load %arg6[%c42_123, %c4_124] : memref<72x36xf32, #tpu.memory_space<vmem>>, vector<6x4xf32>
    tpu.vector_store %arg6[%c42_123, %c4_124], %139 {strides = array<i32>} : memref<72x36xf32, #tpu.memory_space<vmem>>, vector<6x4xf32>,
    %141 = vector.extract_strided_slice %10 {offsets = [74, 0], sizes = [6, 4], strides = [1, 1]} : vector<128x4xf32> to vector<6x4xf32>
    %c42_125 = arith.constant 42 : index
    %c8_126 = arith.constant 8 : index
    %142 = vector.load %arg6[%c42_125, %c8_126] : memref<72x36xf32, #tpu.memory_space<vmem>>, vector<6x4xf32>
    tpu.vector_store %arg6[%c42_125, %c8_126], %141 {strides = array<i32>} : memref<72x36xf32, #tpu.memory_space<vmem>>, vector<6x4xf32>,
    %143 = vector.extract_strided_slice %10 {offsets = [80, 0], sizes = [6, 4], strides = [1, 1]} : vector<128x4xf32> to vector<6x4xf32>
    %c42_127 = arith.constant 42 : index
    %c12_128 = arith.constant 12 : index
    %144 = vector.load %arg6[%c42_127, %c12_128] : memref<72x36xf32, #tpu.memory_space<vmem>>, vector<6x4xf32>
    tpu.vector_store %arg6[%c42_127, %c12_128], %143 {strides = array<i32>} : memref<72x36xf32, #tpu.memory_space<vmem>>, vector<6x4xf32>,
    %145 = vector.extract_strided_slice %10 {offsets = [81, 0], sizes = [6, 4], strides = [1, 1]} : vector<128x4xf32> to vector<6x4xf32>
    %c42_129 = arith.constant 42 : index
    %c16_130 = arith.constant 16 : index
    %146 = vector.load %arg6[%c42_129, %c16_130] : memref<72x36xf32, #tpu.memory_space<vmem>>, vector<6x4xf32>
    tpu.vector_store %arg6[%c42_129, %c16_130], %145 {strides = array<i32>} : memref<72x36xf32, #tpu.memory_space<vmem>>, vector<6x4xf32>,
    %147 = vector.extract_strided_slice %10 {offsets = [82, 0], sizes = [6, 4], strides = [1, 1]} : vector<128x4xf32> to vector<6x4xf32>
    %c42_131 = arith.constant 42 : index
    %c20_132 = arith.constant 20 : index
    %148 = vector.load %arg6[%c42_131, %c20_132] : memref<72x36xf32, #tpu.memory_space<vmem>>, vector<6x4xf32>
    tpu.vector_store %arg6[%c42_131, %c20_132], %147 {strides = array<i32>} : memref<72x36xf32, #tpu.memory_space<vmem>>, vector<6x4xf32>,
    %149 = vector.extract_strided_slice %10 {offsets = [88, 0], sizes = [6, 4], strides = [1, 1]} : vector<128x4xf32> to vector<6x4xf32>
    %c42_133 = arith.constant 42 : index
    %c24_134 = arith.constant 24 : index
    %150 = vector.load %arg6[%c42_133, %c24_134] : memref<72x36xf32, #tpu.memory_space<vmem>>, vector<6x4xf32>
    tpu.vector_store %arg6[%c42_133, %c24_134], %149 {strides = array<i32>} : memref<72x36xf32, #tpu.memory_space<vmem>>, vector<6x4xf32>,
    %151 = vector.extract_strided_slice %10 {offsets = [89, 0], sizes = [6, 4], strides = [1, 1]} : vector<128x4xf32> to vector<6x4xf32>
    %c42_135 = arith.constant 42 : index
    %c28_136 = arith.constant 28 : index
    %152 = vector.load %arg6[%c42_135, %c28_136] : memref<72x36xf32, #tpu.memory_space<vmem>>, vector<6x4xf32>
    tpu.vector_store %arg6[%c42_135, %c28_136], %151 {strides = array<i32>} : memref<72x36xf32, #tpu.memory_space<vmem>>, vector<6x4xf32>,
    %153 = vector.extract_strided_slice %10 {offsets = [90, 0], sizes = [6, 4], strides = [1, 1]} : vector<128x4xf32> to vector<6x4xf32>
    %c42_137 = arith.constant 42 : index
    %c32_138 = arith.constant 32 : index
    %154 = vector.load %arg6[%c42_137, %c32_138] : memref<72x36xf32, #tpu.memory_space<vmem>>, vector<6x4xf32>
    tpu.vector_store %arg6[%c42_137, %c32_138], %153 {strides = array<i32>} : memref<72x36xf32, #tpu.memory_space<vmem>>, vector<6x4xf32>,
    %155 = vector.extract_strided_slice %10 {offsets = [80, 0], sizes = [6, 4], strides = [1, 1]} : vector<128x4xf32> to vector<6x4xf32>
    %c48 = arith.constant 48 : index
    %c0_139 = arith.constant 0 : index
    %156 = vector.load %arg6[%c48, %c0_139] : memref<72x36xf32, #tpu.memory_space<vmem>>, vector<6x4xf32>
    tpu.vector_store %arg6[%c48, %c0_139], %155 {strides = array<i32>} : memref<72x36xf32, #tpu.memory_space<vmem>>, vector<6x4xf32>,
    %157 = vector.extract_strided_slice %10 {offsets = [81, 0], sizes = [6, 4], strides = [1, 1]} : vector<128x4xf32> to vector<6x4xf32>
    %c48_140 = arith.constant 48 : index
    %c4_141 = arith.constant 4 : index
    %158 = vector.load %arg6[%c48_140, %c4_141] : memref<72x36xf32, #tpu.memory_space<vmem>>, vector<6x4xf32>
    tpu.vector_store %arg6[%c48_140, %c4_141], %157 {strides = array<i32>} : memref<72x36xf32, #tpu.memory_space<vmem>>, vector<6x4xf32>,
    %159 = vector.extract_strided_slice %10 {offsets = [82, 0], sizes = [6, 4], strides = [1, 1]} : vector<128x4xf32> to vector<6x4xf32>
    %c48_142 = arith.constant 48 : index
    %c8_143 = arith.constant 8 : index
    %160 = vector.load %arg6[%c48_142, %c8_143] : memref<72x36xf32, #tpu.memory_space<vmem>>, vector<6x4xf32>
    tpu.vector_store %arg6[%c48_142, %c8_143], %159 {strides = array<i32>} : memref<72x36xf32, #tpu.memory_space<vmem>>, vector<6x4xf32>,
    %161 = vector.extract_strided_slice %10 {offsets = [88, 0], sizes = [6, 4], strides = [1, 1]} : vector<128x4xf32> to vector<6x4xf32>
    %c48_144 = arith.constant 48 : index
    %c12_145 = arith.constant 12 : index
    %162 = vector.load %arg6[%c48_144, %c12_145] : memref<72x36xf32, #tpu.memory_space<vmem>>, vector<6x4xf32>
    tpu.vector_store %arg6[%c48_144, %c12_145], %161 {strides = array<i32>} : memref<72x36xf32, #tpu.memory_space<vmem>>, vector<6x4xf32>,
    %163 = vector.extract_strided_slice %10 {offsets = [89, 0], sizes = [6, 4], strides = [1, 1]} : vector<128x4xf32> to vector<6x4xf32>
    %c48_146 = arith.constant 48 : index
    %c16_147 = arith.constant 16 : index
    %164 = vector.load %arg6[%c48_146, %c16_147] : memref<72x36xf32, #tpu.memory_space<vmem>>, vector<6x4xf32>
    tpu.vector_store %arg6[%c48_146, %c16_147], %163 {strides = array<i32>} : memref<72x36xf32, #tpu.memory_space<vmem>>, vector<6x4xf32>,
    %165 = vector.extract_strided_slice %10 {offsets = [90, 0], sizes = [6, 4], strides = [1, 1]} : vector<128x4xf32> to vector<6x4xf32>
    %c48_148 = arith.constant 48 : index
    %c20_149 = arith.constant 20 : index
    %166 = vector.load %arg6[%c48_148, %c20_149] : memref<72x36xf32, #tpu.memory_space<vmem>>, vector<6x4xf32>
    tpu.vector_store %arg6[%c48_148, %c20_149], %165 {strides = array<i32>} : memref<72x36xf32, #tpu.memory_space<vmem>>, vector<6x4xf32>,
    %167 = vector.extract_strided_slice %10 {offsets = [96, 0], sizes = [6, 4], strides = [1, 1]} : vector<128x4xf32> to vector<6x4xf32>
    %c48_150 = arith.constant 48 : index
    %c24_151 = arith.constant 24 : index
    %168 = vector.load %arg6[%c48_150, %c24_151] : memref<72x36xf32, #tpu.memory_space<vmem>>, vector<6x4xf32>
    tpu.vector_store %arg6[%c48_150, %c24_151], %167 {strides = array<i32>} : memref<72x36xf32, #tpu.memory_space<vmem>>, vector<6x4xf32>,
    %169 = vector.extract_strided_slice %10 {offsets = [97, 0], sizes = [6, 4], strides = [1, 1]} : vector<128x4xf32> to vector<6x4xf32>
    %c48_152 = arith.constant 48 : index
    %c28_153 = arith.constant 28 : index
    %170 = vector.load %arg6[%c48_152, %c28_153] : memref<72x36xf32, #tpu.memory_space<vmem>>, vector<6x4xf32>
    tpu.vector_store %arg6[%c48_152, %c28_153], %169 {strides = array<i32>} : memref<72x36xf32, #tpu.memory_space<vmem>>, vector<6x4xf32>,
    %171 = vector.extract_strided_slice %10 {offsets = [98, 0], sizes = [6, 4], strides = [1, 1]} : vector<128x4xf32> to vector<6x4xf32>
    %c48_154 = arith.constant 48 : index
    %c32_155 = arith.constant 32 : index
    %172 = vector.load %arg6[%c48_154, %c32_155] : memref<72x36xf32, #tpu.memory_space<vmem>>, vector<6x4xf32>
    tpu.vector_store %arg6[%c48_154, %c32_155], %171 {strides = array<i32>} : memref<72x36xf32, #tpu.memory_space<vmem>>, vector<6x4xf32>,
    %173 = vector.extract_strided_slice %10 {offsets = [88, 0], sizes = [6, 4], strides = [1, 1]} : vector<128x4xf32> to vector<6x4xf32>
    %c54 = arith.constant 54 : index
    %c0_156 = arith.constant 0 : index
    %174 = vector.load %arg6[%c54, %c0_156] : memref<72x36xf32, #tpu.memory_space<vmem>>, vector<6x4xf32>
    tpu.vector_store %arg6[%c54, %c0_156], %173 {strides = array<i32>} : memref<72x36xf32, #tpu.memory_space<vmem>>, vector<6x4xf32>,
    %175 = vector.extract_strided_slice %10 {offsets = [89, 0], sizes = [6, 4], strides = [1, 1]} : vector<128x4xf32> to vector<6x4xf32>
    %c54_157 = arith.constant 54 : index
    %c4_158 = arith.constant 4 : index
    %176 = vector.load %arg6[%c54_157, %c4_158] : memref<72x36xf32, #tpu.memory_space<vmem>>, vector<6x4xf32>
    tpu.vector_store %arg6[%c54_157, %c4_158], %175 {strides = array<i32>} : memref<72x36xf32, #tpu.memory_space<vmem>>, vector<6x4xf32>,
    %177 = vector.extract_strided_slice %10 {offsets = [90, 0], sizes = [6, 4], strides = [1, 1]} : vector<128x4xf32> to vector<6x4xf32>
    %c54_159 = arith.constant 54 : index
    %c8_160 = arith.constant 8 : index
    %178 = vector.load %arg6[%c54_159, %c8_160] : memref<72x36xf32, #tpu.memory_space<vmem>>, vector<6x4xf32>
    tpu.vector_store %arg6[%c54_159, %c8_160], %177 {strides = array<i32>} : memref<72x36xf32, #tpu.memory_space<vmem>>, vector<6x4xf32>,
    %179 = vector.extract_strided_slice %10 {offsets = [96, 0], sizes = [6, 4], strides = [1, 1]} : vector<128x4xf32> to vector<6x4xf32>
    %c54_161 = arith.constant 54 : index
    %c12_162 = arith.constant 12 : index
    %180 = vector.load %arg6[%c54_161, %c12_162] : memref<72x36xf32, #tpu.memory_space<vmem>>, vector<6x4xf32>
    tpu.vector_store %arg6[%c54_161, %c12_162], %179 {strides = array<i32>} : memref<72x36xf32, #tpu.memory_space<vmem>>, vector<6x4xf32>,
    %181 = vector.extract_strided_slice %10 {offsets = [97, 0], sizes = [6, 4], strides = [1, 1]} : vector<128x4xf32> to vector<6x4xf32>
    %c54_163 = arith.constant 54 : index
    %c16_164 = arith.constant 16 : index
    %182 = vector.load %arg6[%c54_163, %c16_164] : memref<72x36xf32, #tpu.memory_space<vmem>>, vector<6x4xf32>
    tpu.vector_store %arg6[%c54_163, %c16_164], %181 {strides = array<i32>} : memref<72x36xf32, #tpu.memory_space<vmem>>, vector<6x4xf32>,
    %183 = vector.extract_strided_slice %10 {offsets = [98, 0], sizes = [6, 4], strides = [1, 1]} : vector<128x4xf32> to vector<6x4xf32>
    %c54_165 = arith.constant 54 : index
    %c20_166 = arith.constant 20 : index
    %184 = vector.load %arg6[%c54_165, %c20_166] : memref<72x36xf32, #tpu.memory_space<vmem>>, vector<6x4xf32>
    tpu.vector_store %arg6[%c54_165, %c20_166], %183 {strides = array<i32>} : memref<72x36xf32, #tpu.memory_space<vmem>>, vector<6x4xf32>,
    %185 = vector.extract_strided_slice %10 {offsets = [104, 0], sizes = [6, 4], strides = [1, 1]} : vector<128x4xf32> to vector<6x4xf32>
    %c54_167 = arith.constant 54 : index
    %c24_168 = arith.constant 24 : index
    %186 = vector.load %arg6[%c54_167, %c24_168] : memref<72x36xf32, #tpu.memory_space<vmem>>, vector<6x4xf32>
    tpu.vector_store %arg6[%c54_167, %c24_168], %185 {strides = array<i32>} : memref<72x36xf32, #tpu.memory_space<vmem>>, vector<6x4xf32>,
    %187 = vector.extract_strided_slice %10 {offsets = [105, 0], sizes = [6, 4], strides = [1, 1]} : vector<128x4xf32> to vector<6x4xf32>
    %c54_169 = arith.constant 54 : index
    %c28_170 = arith.constant 28 : index
    %188 = vector.load %arg6[%c54_169, %c28_170] : memref<72x36xf32, #tpu.memory_space<vmem>>, vector<6x4xf32>
    tpu.vector_store %arg6[%c54_169, %c28_170], %187 {strides = array<i32>} : memref<72x36xf32, #tpu.memory_space<vmem>>, vector<6x4xf32>,
    %189 = vector.extract_strided_slice %10 {offsets = [106, 0], sizes = [6, 4], strides = [1, 1]} : vector<128x4xf32> to vector<6x4xf32>
    %c54_171 = arith.constant 54 : index
    %c32_172 = arith.constant 32 : index
    %190 = vector.load %arg6[%c54_171, %c32_172] : memref<72x36xf32, #tpu.memory_space<vmem>>, vector<6x4xf32>
    tpu.vector_store %arg6[%c54_171, %c32_172], %189 {strides = array<i32>} : memref<72x36xf32, #tpu.memory_space<vmem>>, vector<6x4xf32>,
    %191 = vector.extract_strided_slice %10 {offsets = [96, 0], sizes = [6, 4], strides = [1, 1]} : vector<128x4xf32> to vector<6x4xf32>
    %c60 = arith.constant 60 : index
    %c0_173 = arith.constant 0 : index
    %192 = vector.load %arg6[%c60, %c0_173] : memref<72x36xf32, #tpu.memory_space<vmem>>, vector<6x4xf32>
    tpu.vector_store %arg6[%c60, %c0_173], %191 {strides = array<i32>} : memref<72x36xf32, #tpu.memory_space<vmem>>, vector<6x4xf32>,
    %193 = vector.extract_strided_slice %10 {offsets = [97, 0], sizes = [6, 4], strides = [1, 1]} : vector<128x4xf32> to vector<6x4xf32>
    %c60_174 = arith.constant 60 : index
    %c4_175 = arith.constant 4 : index
    %194 = vector.load %arg6[%c60_174, %c4_175] : memref<72x36xf32, #tpu.memory_space<vmem>>, vector<6x4xf32>
    tpu.vector_store %arg6[%c60_174, %c4_175], %193 {strides = array<i32>} : memref<72x36xf32, #tpu.memory_space<vmem>>, vector<6x4xf32>,
    %195 = vector.extract_strided_slice %10 {offsets = [98, 0], sizes = [6, 4], strides = [1, 1]} : vector<128x4xf32> to vector<6x4xf32>
    %c60_176 = arith.constant 60 : index
    %c8_177 = arith.constant 8 : index
    %196 = vector.load %arg6[%c60_176, %c8_177] : memref<72x36xf32, #tpu.memory_space<vmem>>, vector<6x4xf32>
    tpu.vector_store %arg6[%c60_176, %c8_177], %195 {strides = array<i32>} : memref<72x36xf32, #tpu.memory_space<vmem>>, vector<6x4xf32>,
    %197 = vector.extract_strided_slice %10 {offsets = [104, 0], sizes = [6, 4], strides = [1, 1]} : vector<128x4xf32> to vector<6x4xf32>
    %c60_178 = arith.constant 60 : index
    %c12_179 = arith.constant 12 : index
    %198 = vector.load %arg6[%c60_178, %c12_179] : memref<72x36xf32, #tpu.memory_space<vmem>>, vector<6x4xf32>
    tpu.vector_store %arg6[%c60_178, %c12_179], %197 {strides = array<i32>} : memref<72x36xf32, #tpu.memory_space<vmem>>, vector<6x4xf32>,
    %199 = vector.extract_strided_slice %10 {offsets = [105, 0], sizes = [6, 4], strides = [1, 1]} : vector<128x4xf32> to vector<6x4xf32>
    %c60_180 = arith.constant 60 : index
    %c16_181 = arith.constant 16 : index
    %200 = vector.load %arg6[%c60_180, %c16_181] : memref<72x36xf32, #tpu.memory_space<vmem>>, vector<6x4xf32>
    tpu.vector_store %arg6[%c60_180, %c16_181], %199 {strides = array<i32>} : memref<72x36xf32, #tpu.memory_space<vmem>>, vector<6x4xf32>,
    %201 = vector.extract_strided_slice %10 {offsets = [106, 0], sizes = [6, 4], strides = [1, 1]} : vector<128x4xf32> to vector<6x4xf32>
    %c60_182 = arith.constant 60 : index
    %c20_183 = arith.constant 20 : index
    %202 = vector.load %arg6[%c60_182, %c20_183] : memref<72x36xf32, #tpu.memory_space<vmem>>, vector<6x4xf32>
    tpu.vector_store %arg6[%c60_182, %c20_183], %201 {strides = array<i32>} : memref<72x36xf32, #tpu.memory_space<vmem>>, vector<6x4xf32>,
    %203 = vector.extract_strided_slice %10 {offsets = [112, 0], sizes = [6, 4], strides = [1, 1]} : vector<128x4xf32> to vector<6x4xf32>
    %c60_184 = arith.constant 60 : index
    %c24_185 = arith.constant 24 : index
    %204 = vector.load %arg6[%c60_184, %c24_185] : memref<72x36xf32, #tpu.memory_space<vmem>>, vector<6x4xf32>
    tpu.vector_store %arg6[%c60_184, %c24_185], %203 {strides = array<i32>} : memref<72x36xf32, #tpu.memory_space<vmem>>, vector<6x4xf32>,
    %205 = vector.extract_strided_slice %10 {offsets = [113, 0], sizes = [6, 4], strides = [1, 1]} : vector<128x4xf32> to vector<6x4xf32>
    %c60_186 = arith.constant 60 : index
    %c28_187 = arith.constant 28 : index
    %206 = vector.load %arg6[%c60_186, %c28_187] : memref<72x36xf32, #tpu.memory_space<vmem>>, vector<6x4xf32>
    tpu.vector_store %arg6[%c60_186, %c28_187], %205 {strides = array<i32>} : memref<72x36xf32, #tpu.memory_space<vmem>>, vector<6x4xf32>,
    %207 = vector.extract_strided_slice %10 {offsets = [114, 0], sizes = [6, 4], strides = [1, 1]} : vector<128x4xf32> to vector<6x4xf32>
    %c60_188 = arith.constant 60 : index
    %c32_189 = arith.constant 32 : index
    %208 = vector.load %arg6[%c60_188, %c32_189] : memref<72x36xf32, #tpu.memory_space<vmem>>, vector<6x4xf32>
    tpu.vector_store %arg6[%c60_188, %c32_189], %207 {strides = array<i32>} : memref<72x36xf32, #tpu.memory_space<vmem>>, vector<6x4xf32>,
    %209 = vector.extract_strided_slice %10 {offsets = [104, 0], sizes = [6, 4], strides = [1, 1]} : vector<128x4xf32> to vector<6x4xf32>
    %c66 = arith.constant 66 : index
    %c0_190 = arith.constant 0 : index
    %210 = vector.load %arg6[%c66, %c0_190] : memref<72x36xf32, #tpu.memory_space<vmem>>, vector<6x4xf32>
    tpu.vector_store %arg6[%c66, %c0_190], %209 {strides = array<i32>} : memref<72x36xf32, #tpu.memory_space<vmem>>, vector<6x4xf32>,
    %211 = vector.extract_strided_slice %10 {offsets = [105, 0], sizes = [6, 4], strides = [1, 1]} : vector<128x4xf32> to vector<6x4xf32>
    %c66_191 = arith.constant 66 : index
    %c4_192 = arith.constant 4 : index
    %212 = vector.load %arg6[%c66_191, %c4_192] : memref<72x36xf32, #tpu.memory_space<vmem>>, vector<6x4xf32>
    tpu.vector_store %arg6[%c66_191, %c4_192], %211 {strides = array<i32>} : memref<72x36xf32, #tpu.memory_space<vmem>>, vector<6x4xf32>,
    %213 = vector.extract_strided_slice %10 {offsets = [106, 0], sizes = [6, 4], strides = [1, 1]} : vector<128x4xf32> to vector<6x4xf32>
    %c66_193 = arith.constant 66 : index
    %c8_194 = arith.constant 8 : index
    %214 = vector.load %arg6[%c66_193, %c8_194] : memref<72x36xf32, #tpu.memory_space<vmem>>, vector<6x4xf32>
    tpu.vector_store %arg6[%c66_193, %c8_194], %213 {strides = array<i32>} : memref<72x36xf32, #tpu.memory_space<vmem>>, vector<6x4xf32>,
    %215 = vector.extract_strided_slice %10 {offsets = [112, 0], sizes = [6, 4], strides = [1, 1]} : vector<128x4xf32> to vector<6x4xf32>
    %c66_195 = arith.constant 66 : index
    %c12_196 = arith.constant 12 : index
    %216 = vector.load %arg6[%c66_195, %c12_196] : memref<72x36xf32, #tpu.memory_space<vmem>>, vector<6x4xf32>
    tpu.vector_store %arg6[%c66_195, %c12_196], %215 {strides = array<i32>} : memref<72x36xf32, #tpu.memory_space<vmem>>, vector<6x4xf32>,
    %217 = vector.extract_strided_slice %10 {offsets = [113, 0], sizes = [6, 4], strides = [1, 1]} : vector<128x4xf32> to vector<6x4xf32>
    %c66_197 = arith.constant 66 : index
    %c16_198 = arith.constant 16 : index
    %218 = vector.load %arg6[%c66_197, %c16_198] : memref<72x36xf32, #tpu.memory_space<vmem>>, vector<6x4xf32>
    tpu.vector_store %arg6[%c66_197, %c16_198], %217 {strides = array<i32>} : memref<72x36xf32, #tpu.memory_space<vmem>>, vector<6x4xf32>,
    %219 = vector.extract_strided_slice %10 {offsets = [114, 0], sizes = [6, 4], strides = [1, 1]} : vector<128x4xf32> to vector<6x4xf32>
    %c66_199 = arith.constant 66 : index
    %c20_200 = arith.constant 20 : index
    %220 = vector.load %arg6[%c66_199, %c20_200] : memref<72x36xf32, #tpu.memory_space<vmem>>, vector<6x4xf32>
    tpu.vector_store %arg6[%c66_199, %c20_200], %219 {strides = array<i32>} : memref<72x36xf32, #tpu.memory_space<vmem>>, vector<6x4xf32>,
    %221 = vector.extract_strided_slice %10 {offsets = [120, 0], sizes = [6, 4], strides = [1, 1]} : vector<128x4xf32> to vector<6x4xf32>
    %c66_201 = arith.constant 66 : index
    %c24_202 = arith.constant 24 : index
    %222 = vector.load %arg6[%c66_201, %c24_202] : memref<72x36xf32, #tpu.memory_space<vmem>>, vector<6x4xf32>
    tpu.vector_store %arg6[%c66_201, %c24_202], %221 {strides = array<i32>} : memref<72x36xf32, #tpu.memory_space<vmem>>, vector<6x4xf32>,
    %223 = vector.extract_strided_slice %10 {offsets = [121, 0], sizes = [6, 4], strides = [1, 1]} : vector<128x4xf32> to vector<6x4xf32>
    %c66_203 = arith.constant 66 : index
    %c28_204 = arith.constant 28 : index
    %224 = vector.load %arg6[%c66_203, %c28_204] : memref<72x36xf32, #tpu.memory_space<vmem>>, vector<6x4xf32>
    tpu.vector_store %arg6[%c66_203, %c28_204], %223 {strides = array<i32>} : memref<72x36xf32, #tpu.memory_space<vmem>>, vector<6x4xf32>,
    %225 = vector.extract_strided_slice %10 {offsets = [122, 0], sizes = [6, 4], strides = [1, 1]} : vector<128x4xf32> to vector<6x4xf32>
    %c66_205 = arith.constant 66 : index
    %c32_206 = arith.constant 32 : index
    %226 = vector.load %arg6[%c66_205, %c32_206] : memref<72x36xf32, #tpu.memory_space<vmem>>, vector<6x4xf32>
    tpu.vector_store %arg6[%c66_205, %c32_206], %225 {strides = array<i32>} : memref<72x36xf32, #tpu.memory_space<vmem>>, vector<6x4xf32>,
    %c0_207 = arith.constant 0 : index
    %c0_208 = arith.constant 0 : index
    %227 = vector.load %arg6[%c0_207, %c0_208] : memref<72x36xf32, #tpu.memory_space<vmem>>, vector<72x36xf32>
    %c0_209 = arith.constant 0 : index
    %c0_210 = arith.constant 0 : index
    %228 = vector.load %arg1[%c0_209, %c0_210] : memref<36x8xf32, #tpu.memory_space<vmem>>, vector<36x8xf32>
    %cst = arith.constant dense<0.000000e+00> : vector<72x8xf32>
    %229 = tpu.matmul %227, %228, %cst {dimension_numbers = #tpu.dot_dimension_numbers<[1], [0], [0], [1], [0, 0, 1, 1], [], []>} : vector<72x36xf32>, vector<36x8xf32>, vector<72x8xf32> -> vector<72x8xf32>
    %c0_211 = arith.constant 0 : index
    %c0_212 = arith.constant 0 : index
    %230 = vector.load %arg3[%c0_211, %c0_212] : memref<2x8xf32, #tpu.memory_space<vmem>>, vector<2x8xf32>
    %231 = vector.extract_strided_slice %230 {offsets = [0, 0], sizes = [1, 8], strides = [1, 1]} : vector<2x8xf32> to vector<1x8xf32>
    %232 = vector.extract_strided_slice %230 {offsets = [1, 0], sizes = [1, 8], strides = [1, 1]} : vector<2x8xf32> to vector<1x8xf32>
    %cst_213 = arith.constant dense<0.000000e+00> : vector<8xf32>
    %233 = vector.multi_reduction <add>, %229, %cst_213 [0] : vector<72x8xf32> to vector<8xf32>
    %234 = vector.shape_cast %233 : vector<8xf32> to vector<1x8xf32>
    %cst_214 = arith.constant 7.200000e+01 : f32
    %235 = vector.broadcast %cst_214 : f32 to vector<1x8xf32>
    %236 = arith.divf %234, %235 : vector<1x8xf32>
    %237 = vector.broadcast %236 : vector<1x8xf32> to vector<72x8xf32>
    %238 = arith.subf %229, %237 : vector<72x8xf32>
    %239 = arith.mulf %238, %238 : vector<72x8xf32>
    %cst_215 = arith.constant dense<0.000000e+00> : vector<8xf32>
    %240 = vector.multi_reduction <add>, %239, %cst_215 [0] : vector<72x8xf32> to vector<8xf32>
    %241 = vector.shape_cast %240 : vector<8xf32> to vector<1x8xf32>
    %cst_216 = arith.constant 7.200000e+01 : f32
    %242 = vector.broadcast %cst_216 : f32 to vector<1x8xf32>
    %243 = arith.divf %241, %242 : vector<1x8xf32>
    %cst_217 = arith.constant 9.99999974E-6 : f32
    %244 = vector.broadcast %cst_217 : f32 to vector<1x8xf32>
    %245 = arith.addf %243, %244 : vector<1x8xf32>
    %246 = math.rsqrt %245 : vector<1x8xf32>
    %247 = arith.mulf %231, %246 : vector<1x8xf32>
    %248 = vector.broadcast %247 : vector<1x8xf32> to vector<72x8xf32>
    %249 = arith.mulf %229, %248 : vector<72x8xf32>
    %250 = arith.mulf %236, %247 : vector<1x8xf32>
    %251 = arith.subf %232, %250 : vector<1x8xf32>
    %252 = vector.broadcast %251 : vector<1x8xf32> to vector<72x8xf32>
    %253 = arith.addf %249, %252 : vector<72x8xf32>
    %cst_218 = arith.constant 0.000000e+00 : f32
    %254 = vector.broadcast %cst_218 : f32 to vector<72x8xf32>
    %255 = arith.maximumf %253, %254 : vector<72x8xf32>
    %256 = vector.extract_strided_slice %255 {offsets = [0, 0], sizes = [4, 8], strides = [1, 1]} : vector<72x8xf32> to vector<4x8xf32>
    %c0_219 = arith.constant 0 : index
    %c0_220 = arith.constant 0 : index
    %257 = vector.load %arg7[%c0_219, %c0_220] : memref<32x72xf32, #tpu.memory_space<vmem>>, vector<4x8xf32>
    tpu.vector_store %arg7[%c0_219, %c0_220], %256 {strides = array<i32>} : memref<32x72xf32, #tpu.memory_space<vmem>>, vector<4x8xf32>,
    %258 = vector.extract_strided_slice %255 {offsets = [1, 0], sizes = [4, 8], strides = [1, 1]} : vector<72x8xf32> to vector<4x8xf32>
    %c0_221 = arith.constant 0 : index
    %c8_222 = arith.constant 8 : index
    %259 = vector.load %arg7[%c0_221, %c8_222] : memref<32x72xf32, #tpu.memory_space<vmem>>, vector<4x8xf32>
    tpu.vector_store %arg7[%c0_221, %c8_222], %258 {strides = array<i32>} : memref<32x72xf32, #tpu.memory_space<vmem>>, vector<4x8xf32>,
    %260 = vector.extract_strided_slice %255 {offsets = [2, 0], sizes = [4, 8], strides = [1, 1]} : vector<72x8xf32> to vector<4x8xf32>
    %c0_223 = arith.constant 0 : index
    %c16_224 = arith.constant 16 : index
    %261 = vector.load %arg7[%c0_223, %c16_224] : memref<32x72xf32, #tpu.memory_space<vmem>>, vector<4x8xf32>
    tpu.vector_store %arg7[%c0_223, %c16_224], %260 {strides = array<i32>} : memref<32x72xf32, #tpu.memory_space<vmem>>, vector<4x8xf32>,
    %262 = vector.extract_strided_slice %255 {offsets = [6, 0], sizes = [4, 8], strides = [1, 1]} : vector<72x8xf32> to vector<4x8xf32>
    %c0_225 = arith.constant 0 : index
    %c24_226 = arith.constant 24 : index
    %263 = vector.load %arg7[%c0_225, %c24_226] : memref<32x72xf32, #tpu.memory_space<vmem>>, vector<4x8xf32>
    tpu.vector_store %arg7[%c0_225, %c24_226], %262 {strides = array<i32>} : memref<32x72xf32, #tpu.memory_space<vmem>>, vector<4x8xf32>,
    %264 = vector.extract_strided_slice %255 {offsets = [7, 0], sizes = [4, 8], strides = [1, 1]} : vector<72x8xf32> to vector<4x8xf32>
    %c0_227 = arith.constant 0 : index
    %c32_228 = arith.constant 32 : index
    %265 = vector.load %arg7[%c0_227, %c32_228] : memref<32x72xf32, #tpu.memory_space<vmem>>, vector<4x8xf32>
    tpu.vector_store %arg7[%c0_227, %c32_228], %264 {strides = array<i32>} : memref<32x72xf32, #tpu.memory_space<vmem>>, vector<4x8xf32>,
    %266 = vector.extract_strided_slice %255 {offsets = [8, 0], sizes = [4, 8], strides = [1, 1]} : vector<72x8xf32> to vector<4x8xf32>
    %c0_229 = arith.constant 0 : index
    %c40 = arith.constant 40 : index
    %267 = vector.load %arg7[%c0_229, %c40] : memref<32x72xf32, #tpu.memory_space<vmem>>, vector<4x8xf32>
    tpu.vector_store %arg7[%c0_229, %c40], %266 {strides = array<i32>} : memref<32x72xf32, #tpu.memory_space<vmem>>, vector<4x8xf32>,
    %268 = vector.extract_strided_slice %255 {offsets = [12, 0], sizes = [4, 8], strides = [1, 1]} : vector<72x8xf32> to vector<4x8xf32>
    %c0_230 = arith.constant 0 : index
    %c48_231 = arith.constant 48 : index
    %269 = vector.load %arg7[%c0_230, %c48_231] : memref<32x72xf32, #tpu.memory_space<vmem>>, vector<4x8xf32>
    tpu.vector_store %arg7[%c0_230, %c48_231], %268 {strides = array<i32>} : memref<32x72xf32, #tpu.memory_space<vmem>>, vector<4x8xf32>,
    %270 = vector.extract_strided_slice %255 {offsets = [13, 0], sizes = [4, 8], strides = [1, 1]} : vector<72x8xf32> to vector<4x8xf32>
    %c0_232 = arith.constant 0 : index
    %c56 = arith.constant 56 : index
    %271 = vector.load %arg7[%c0_232, %c56] : memref<32x72xf32, #tpu.memory_space<vmem>>, vector<4x8xf32>
    tpu.vector_store %arg7[%c0_232, %c56], %270 {strides = array<i32>} : memref<32x72xf32, #tpu.memory_space<vmem>>, vector<4x8xf32>,
    %272 = vector.extract_strided_slice %255 {offsets = [14, 0], sizes = [4, 8], strides = [1, 1]} : vector<72x8xf32> to vector<4x8xf32>
    %c0_233 = arith.constant 0 : index
    %c64 = arith.constant 64 : index
    %273 = vector.load %arg7[%c0_233, %c64] : memref<32x72xf32, #tpu.memory_space<vmem>>, vector<4x8xf32>
    tpu.vector_store %arg7[%c0_233, %c64], %272 {strides = array<i32>} : memref<32x72xf32, #tpu.memory_space<vmem>>, vector<4x8xf32>,
    %274 = vector.extract_strided_slice %255 {offsets = [6, 0], sizes = [4, 8], strides = [1, 1]} : vector<72x8xf32> to vector<4x8xf32>
    %c4_234 = arith.constant 4 : index
    %c0_235 = arith.constant 0 : index
    %275 = vector.load %arg7[%c4_234, %c0_235] : memref<32x72xf32, #tpu.memory_space<vmem>>, vector<4x8xf32>
    tpu.vector_store %arg7[%c4_234, %c0_235], %274 {strides = array<i32>} : memref<32x72xf32, #tpu.memory_space<vmem>>, vector<4x8xf32>,
    %276 = vector.extract_strided_slice %255 {offsets = [7, 0], sizes = [4, 8], strides = [1, 1]} : vector<72x8xf32> to vector<4x8xf32>
    %c4_236 = arith.constant 4 : index
    %c8_237 = arith.constant 8 : index
    %277 = vector.load %arg7[%c4_236, %c8_237] : memref<32x72xf32, #tpu.memory_space<vmem>>, vector<4x8xf32>
    tpu.vector_store %arg7[%c4_236, %c8_237], %276 {strides = array<i32>} : memref<32x72xf32, #tpu.memory_space<vmem>>, vector<4x8xf32>,
    %278 = vector.extract_strided_slice %255 {offsets = [8, 0], sizes = [4, 8], strides = [1, 1]} : vector<72x8xf32> to vector<4x8xf32>
    %c4_238 = arith.constant 4 : index
    %c16_239 = arith.constant 16 : index
    %279 = vector.load %arg7[%c4_238, %c16_239] : memref<32x72xf32, #tpu.memory_space<vmem>>, vector<4x8xf32>
    tpu.vector_store %arg7[%c4_238, %c16_239], %278 {strides = array<i32>} : memref<32x72xf32, #tpu.memory_space<vmem>>, vector<4x8xf32>,
    %280 = vector.extract_strided_slice %255 {offsets = [12, 0], sizes = [4, 8], strides = [1, 1]} : vector<72x8xf32> to vector<4x8xf32>
    %c4_240 = arith.constant 4 : index
    %c24_241 = arith.constant 24 : index
    %281 = vector.load %arg7[%c4_240, %c24_241] : memref<32x72xf32, #tpu.memory_space<vmem>>, vector<4x8xf32>
    tpu.vector_store %arg7[%c4_240, %c24_241], %280 {strides = array<i32>} : memref<32x72xf32, #tpu.memory_space<vmem>>, vector<4x8xf32>,
    %282 = vector.extract_strided_slice %255 {offsets = [13, 0], sizes = [4, 8], strides = [1, 1]} : vector<72x8xf32> to vector<4x8xf32>
    %c4_242 = arith.constant 4 : index
    %c32_243 = arith.constant 32 : index
    %283 = vector.load %arg7[%c4_242, %c32_243] : memref<32x72xf32, #tpu.memory_space<vmem>>, vector<4x8xf32>
    tpu.vector_store %arg7[%c4_242, %c32_243], %282 {strides = array<i32>} : memref<32x72xf32, #tpu.memory_space<vmem>>, vector<4x8xf32>,
    %284 = vector.extract_strided_slice %255 {offsets = [14, 0], sizes = [4, 8], strides = [1, 1]} : vector<72x8xf32> to vector<4x8xf32>
    %c4_244 = arith.constant 4 : index
    %c40_245 = arith.constant 40 : index
    %285 = vector.load %arg7[%c4_244, %c40_245] : memref<32x72xf32, #tpu.memory_space<vmem>>, vector<4x8xf32>
    tpu.vector_store %arg7[%c4_244, %c40_245], %284 {strides = array<i32>} : memref<32x72xf32, #tpu.memory_space<vmem>>, vector<4x8xf32>,
    %286 = vector.extract_strided_slice %255 {offsets = [18, 0], sizes = [4, 8], strides = [1, 1]} : vector<72x8xf32> to vector<4x8xf32>
    %c4_246 = arith.constant 4 : index
    %c48_247 = arith.constant 48 : index
    %287 = vector.load %arg7[%c4_246, %c48_247] : memref<32x72xf32, #tpu.memory_space<vmem>>, vector<4x8xf32>
    tpu.vector_store %arg7[%c4_246, %c48_247], %286 {strides = array<i32>} : memref<32x72xf32, #tpu.memory_space<vmem>>, vector<4x8xf32>,
    %288 = vector.extract_strided_slice %255 {offsets = [19, 0], sizes = [4, 8], strides = [1, 1]} : vector<72x8xf32> to vector<4x8xf32>
    %c4_248 = arith.constant 4 : index
    %c56_249 = arith.constant 56 : index
    %289 = vector.load %arg7[%c4_248, %c56_249] : memref<32x72xf32, #tpu.memory_space<vmem>>, vector<4x8xf32>
    tpu.vector_store %arg7[%c4_248, %c56_249], %288 {strides = array<i32>} : memref<32x72xf32, #tpu.memory_space<vmem>>, vector<4x8xf32>,
    %290 = vector.extract_strided_slice %255 {offsets = [20, 0], sizes = [4, 8], strides = [1, 1]} : vector<72x8xf32> to vector<4x8xf32>
    %c4_250 = arith.constant 4 : index
    %c64_251 = arith.constant 64 : index
    %291 = vector.load %arg7[%c4_250, %c64_251] : memref<32x72xf32, #tpu.memory_space<vmem>>, vector<4x8xf32>
    tpu.vector_store %arg7[%c4_250, %c64_251], %290 {strides = array<i32>} : memref<32x72xf32, #tpu.memory_space<vmem>>, vector<4x8xf32>,
    %292 = vector.extract_strided_slice %255 {offsets = [12, 0], sizes = [4, 8], strides = [1, 1]} : vector<72x8xf32> to vector<4x8xf32>
    %c8_252 = arith.constant 8 : index
    %c0_253 = arith.constant 0 : index
    %293 = vector.load %arg7[%c8_252, %c0_253] : memref<32x72xf32, #tpu.memory_space<vmem>>, vector<4x8xf32>
    tpu.vector_store %arg7[%c8_252, %c0_253], %292 {strides = array<i32>} : memref<32x72xf32, #tpu.memory_space<vmem>>, vector<4x8xf32>,
    %294 = vector.extract_strided_slice %255 {offsets = [13, 0], sizes = [4, 8], strides = [1, 1]} : vector<72x8xf32> to vector<4x8xf32>
    %c8_254 = arith.constant 8 : index
    %c8_255 = arith.constant 8 : index
    %295 = vector.load %arg7[%c8_254, %c8_255] : memref<32x72xf32, #tpu.memory_space<vmem>>, vector<4x8xf32>
    tpu.vector_store %arg7[%c8_254, %c8_255], %294 {strides = array<i32>} : memref<32x72xf32, #tpu.memory_space<vmem>>, vector<4x8xf32>,
    %296 = vector.extract_strided_slice %255 {offsets = [14, 0], sizes = [4, 8], strides = [1, 1]} : vector<72x8xf32> to vector<4x8xf32>
    %c8_256 = arith.constant 8 : index
    %c16_257 = arith.constant 16 : index
    %297 = vector.load %arg7[%c8_256, %c16_257] : memref<32x72xf32, #tpu.memory_space<vmem>>, vector<4x8xf32>
    tpu.vector_store %arg7[%c8_256, %c16_257], %296 {strides = array<i32>} : memref<32x72xf32, #tpu.memory_space<vmem>>, vector<4x8xf32>,
    %298 = vector.extract_strided_slice %255 {offsets = [18, 0], sizes = [4, 8], strides = [1, 1]} : vector<72x8xf32> to vector<4x8xf32>
    %c8_258 = arith.constant 8 : index
    %c24_259 = arith.constant 24 : index
    %299 = vector.load %arg7[%c8_258, %c24_259] : memref<32x72xf32, #tpu.memory_space<vmem>>, vector<4x8xf32>
    tpu.vector_store %arg7[%c8_258, %c24_259], %298 {strides = array<i32>} : memref<32x72xf32, #tpu.memory_space<vmem>>, vector<4x8xf32>,
    %300 = vector.extract_strided_slice %255 {offsets = [19, 0], sizes = [4, 8], strides = [1, 1]} : vector<72x8xf32> to vector<4x8xf32>
    %c8_260 = arith.constant 8 : index
    %c32_261 = arith.constant 32 : index
    %301 = vector.load %arg7[%c8_260, %c32_261] : memref<32x72xf32, #tpu.memory_space<vmem>>, vector<4x8xf32>
    tpu.vector_store %arg7[%c8_260, %c32_261], %300 {strides = array<i32>} : memref<32x72xf32, #tpu.memory_space<vmem>>, vector<4x8xf32>,
    %302 = vector.extract_strided_slice %255 {offsets = [20, 0], sizes = [4, 8], strides = [1, 1]} : vector<72x8xf32> to vector<4x8xf32>
    %c8_262 = arith.constant 8 : index
    %c40_263 = arith.constant 40 : index
    %303 = vector.load %arg7[%c8_262, %c40_263] : memref<32x72xf32, #tpu.memory_space<vmem>>, vector<4x8xf32>
    tpu.vector_store %arg7[%c8_262, %c40_263], %302 {strides = array<i32>} : memref<32x72xf32, #tpu.memory_space<vmem>>, vector<4x8xf32>,
    %304 = vector.extract_strided_slice %255 {offsets = [24, 0], sizes = [4, 8], strides = [1, 1]} : vector<72x8xf32> to vector<4x8xf32>
    %c8_264 = arith.constant 8 : index
    %c48_265 = arith.constant 48 : index
    %305 = vector.load %arg7[%c8_264, %c48_265] : memref<32x72xf32, #tpu.memory_space<vmem>>, vector<4x8xf32>
    tpu.vector_store %arg7[%c8_264, %c48_265], %304 {strides = array<i32>} : memref<32x72xf32, #tpu.memory_space<vmem>>, vector<4x8xf32>,
    %306 = vector.extract_strided_slice %255 {offsets = [25, 0], sizes = [4, 8], strides = [1, 1]} : vector<72x8xf32> to vector<4x8xf32>
    %c8_266 = arith.constant 8 : index
    %c56_267 = arith.constant 56 : index
    %307 = vector.load %arg7[%c8_266, %c56_267] : memref<32x72xf32, #tpu.memory_space<vmem>>, vector<4x8xf32>
    tpu.vector_store %arg7[%c8_266, %c56_267], %306 {strides = array<i32>} : memref<32x72xf32, #tpu.memory_space<vmem>>, vector<4x8xf32>,
    %308 = vector.extract_strided_slice %255 {offsets = [26, 0], sizes = [4, 8], strides = [1, 1]} : vector<72x8xf32> to vector<4x8xf32>
    %c8_268 = arith.constant 8 : index
    %c64_269 = arith.constant 64 : index
    %309 = vector.load %arg7[%c8_268, %c64_269] : memref<32x72xf32, #tpu.memory_space<vmem>>, vector<4x8xf32>
    tpu.vector_store %arg7[%c8_268, %c64_269], %308 {strides = array<i32>} : memref<32x72xf32, #tpu.memory_space<vmem>>, vector<4x8xf32>,
    %310 = vector.extract_strided_slice %255 {offsets = [18, 0], sizes = [4, 8], strides = [1, 1]} : vector<72x8xf32> to vector<4x8xf32>
    %c12_270 = arith.constant 12 : index
    %c0_271 = arith.constant 0 : index
    %311 = vector.load %arg7[%c12_270, %c0_271] : memref<32x72xf32, #tpu.memory_space<vmem>>, vector<4x8xf32>
    tpu.vector_store %arg7[%c12_270, %c0_271], %310 {strides = array<i32>} : memref<32x72xf32, #tpu.memory_space<vmem>>, vector<4x8xf32>,
    %312 = vector.extract_strided_slice %255 {offsets = [19, 0], sizes = [4, 8], strides = [1, 1]} : vector<72x8xf32> to vector<4x8xf32>
    %c12_272 = arith.constant 12 : index
    %c8_273 = arith.constant 8 : index
    %313 = vector.load %arg7[%c12_272, %c8_273] : memref<32x72xf32, #tpu.memory_space<vmem>>, vector<4x8xf32>
    tpu.vector_store %arg7[%c12_272, %c8_273], %312 {strides = array<i32>} : memref<32x72xf32, #tpu.memory_space<vmem>>, vector<4x8xf32>,
    %314 = vector.extract_strided_slice %255 {offsets = [20, 0], sizes = [4, 8], strides = [1, 1]} : vector<72x8xf32> to vector<4x8xf32>
    %c12_274 = arith.constant 12 : index
    %c16_275 = arith.constant 16 : index
    %315 = vector.load %arg7[%c12_274, %c16_275] : memref<32x72xf32, #tpu.memory_space<vmem>>, vector<4x8xf32>
    tpu.vector_store %arg7[%c12_274, %c16_275], %314 {strides = array<i32>} : memref<32x72xf32, #tpu.memory_space<vmem>>, vector<4x8xf32>,
    %316 = vector.extract_strided_slice %255 {offsets = [24, 0], sizes = [4, 8], strides = [1, 1]} : vector<72x8xf32> to vector<4x8xf32>
    %c12_276 = arith.constant 12 : index
    %c24_277 = arith.constant 24 : index
    %317 = vector.load %arg7[%c12_276, %c24_277] : memref<32x72xf32, #tpu.memory_space<vmem>>, vector<4x8xf32>
    tpu.vector_store %arg7[%c12_276, %c24_277], %316 {strides = array<i32>} : memref<32x72xf32, #tpu.memory_space<vmem>>, vector<4x8xf32>,
    %318 = vector.extract_strided_slice %255 {offsets = [25, 0], sizes = [4, 8], strides = [1, 1]} : vector<72x8xf32> to vector<4x8xf32>
    %c12_278 = arith.constant 12 : index
    %c32_279 = arith.constant 32 : index
    %319 = vector.load %arg7[%c12_278, %c32_279] : memref<32x72xf32, #tpu.memory_space<vmem>>, vector<4x8xf32>
    tpu.vector_store %arg7[%c12_278, %c32_279], %318 {strides = array<i32>} : memref<32x72xf32, #tpu.memory_space<vmem>>, vector<4x8xf32>,
    %320 = vector.extract_strided_slice %255 {offsets = [26, 0], sizes = [4, 8], strides = [1, 1]} : vector<72x8xf32> to vector<4x8xf32>
    %c12_280 = arith.constant 12 : index
    %c40_281 = arith.constant 40 : index
    %321 = vector.load %arg7[%c12_280, %c40_281] : memref<32x72xf32, #tpu.memory_space<vmem>>, vector<4x8xf32>
    tpu.vector_store %arg7[%c12_280, %c40_281], %320 {strides = array<i32>} : memref<32x72xf32, #tpu.memory_space<vmem>>, vector<4x8xf32>,
    %322 = vector.extract_strided_slice %255 {offsets = [30, 0], sizes = [4, 8], strides = [1, 1]} : vector<72x8xf32> to vector<4x8xf32>
    %c12_282 = arith.constant 12 : index
    %c48_283 = arith.constant 48 : index
    %323 = vector.load %arg7[%c12_282, %c48_283] : memref<32x72xf32, #tpu.memory_space<vmem>>, vector<4x8xf32>
    tpu.vector_store %arg7[%c12_282, %c48_283], %322 {strides = array<i32>} : memref<32x72xf32, #tpu.memory_space<vmem>>, vector<4x8xf32>,
    %324 = vector.extract_strided_slice %255 {offsets = [31, 0], sizes = [4, 8], strides = [1, 1]} : vector<72x8xf32> to vector<4x8xf32>
    %c12_284 = arith.constant 12 : index
    %c56_285 = arith.constant 56 : index
    %325 = vector.load %arg7[%c12_284, %c56_285] : memref<32x72xf32, #tpu.memory_space<vmem>>, vector<4x8xf32>
    tpu.vector_store %arg7[%c12_284, %c56_285], %324 {strides = array<i32>} : memref<32x72xf32, #tpu.memory_space<vmem>>, vector<4x8xf32>,
    %326 = vector.extract_strided_slice %255 {offsets = [32, 0], sizes = [4, 8], strides = [1, 1]} : vector<72x8xf32> to vector<4x8xf32>
    %c12_286 = arith.constant 12 : index
    %c64_287 = arith.constant 64 : index
    %327 = vector.load %arg7[%c12_286, %c64_287] : memref<32x72xf32, #tpu.memory_space<vmem>>, vector<4x8xf32>
    tpu.vector_store %arg7[%c12_286, %c64_287], %326 {strides = array<i32>} : memref<32x72xf32, #tpu.memory_space<vmem>>, vector<4x8xf32>,
    %328 = vector.extract_strided_slice %255 {offsets = [36, 0], sizes = [4, 8], strides = [1, 1]} : vector<72x8xf32> to vector<4x8xf32>
    %c16_288 = arith.constant 16 : index
    %c0_289 = arith.constant 0 : index
    %329 = vector.load %arg7[%c16_288, %c0_289] : memref<32x72xf32, #tpu.memory_space<vmem>>, vector<4x8xf32>
    tpu.vector_store %arg7[%c16_288, %c0_289], %328 {strides = array<i32>} : memref<32x72xf32, #tpu.memory_space<vmem>>, vector<4x8xf32>,
    %330 = vector.extract_strided_slice %255 {offsets = [37, 0], sizes = [4, 8], strides = [1, 1]} : vector<72x8xf32> to vector<4x8xf32>
    %c16_290 = arith.constant 16 : index
    %c8_291 = arith.constant 8 : index
    %331 = vector.load %arg7[%c16_290, %c8_291] : memref<32x72xf32, #tpu.memory_space<vmem>>, vector<4x8xf32>
    tpu.vector_store %arg7[%c16_290, %c8_291], %330 {strides = array<i32>} : memref<32x72xf32, #tpu.memory_space<vmem>>, vector<4x8xf32>,
    %332 = vector.extract_strided_slice %255 {offsets = [38, 0], sizes = [4, 8], strides = [1, 1]} : vector<72x8xf32> to vector<4x8xf32>
    %c16_292 = arith.constant 16 : index
    %c16_293 = arith.constant 16 : index
    %333 = vector.load %arg7[%c16_292, %c16_293] : memref<32x72xf32, #tpu.memory_space<vmem>>, vector<4x8xf32>
    tpu.vector_store %arg7[%c16_292, %c16_293], %332 {strides = array<i32>} : memref<32x72xf32, #tpu.memory_space<vmem>>, vector<4x8xf32>,
    %334 = vector.extract_strided_slice %255 {offsets = [42, 0], sizes = [4, 8], strides = [1, 1]} : vector<72x8xf32> to vector<4x8xf32>
    %c16_294 = arith.constant 16 : index
    %c24_295 = arith.constant 24 : index
    %335 = vector.load %arg7[%c16_294, %c24_295] : memref<32x72xf32, #tpu.memory_space<vmem>>, vector<4x8xf32>
    tpu.vector_store %arg7[%c16_294, %c24_295], %334 {strides = array<i32>} : memref<32x72xf32, #tpu.memory_space<vmem>>, vector<4x8xf32>,
    %336 = vector.extract_strided_slice %255 {offsets = [43, 0], sizes = [4, 8], strides = [1, 1]} : vector<72x8xf32> to vector<4x8xf32>
    %c16_296 = arith.constant 16 : index
    %c32_297 = arith.constant 32 : index
    %337 = vector.load %arg7[%c16_296, %c32_297] : memref<32x72xf32, #tpu.memory_space<vmem>>, vector<4x8xf32>
    tpu.vector_store %arg7[%c16_296, %c32_297], %336 {strides = array<i32>} : memref<32x72xf32, #tpu.memory_space<vmem>>, vector<4x8xf32>,
    %338 = vector.extract_strided_slice %255 {offsets = [44, 0], sizes = [4, 8], strides = [1, 1]} : vector<72x8xf32> to vector<4x8xf32>
    %c16_298 = arith.constant 16 : index
    %c40_299 = arith.constant 40 : index
    %339 = vector.load %arg7[%c16_298, %c40_299] : memref<32x72xf32, #tpu.memory_space<vmem>>, vector<4x8xf32>
    tpu.vector_store %arg7[%c16_298, %c40_299], %338 {strides = array<i32>} : memref<32x72xf32, #tpu.memory_space<vmem>>, vector<4x8xf32>,
    %340 = vector.extract_strided_slice %255 {offsets = [48, 0], sizes = [4, 8], strides = [1, 1]} : vector<72x8xf32> to vector<4x8xf32>
    %c16_300 = arith.constant 16 : index
    %c48_301 = arith.constant 48 : index
    %341 = vector.load %arg7[%c16_300, %c48_301] : memref<32x72xf32, #tpu.memory_space<vmem>>, vector<4x8xf32>
    tpu.vector_store %arg7[%c16_300, %c48_301], %340 {strides = array<i32>} : memref<32x72xf32, #tpu.memory_space<vmem>>, vector<4x8xf32>,
    %342 = vector.extract_strided_slice %255 {offsets = [49, 0], sizes = [4, 8], strides = [1, 1]} : vector<72x8xf32> to vector<4x8xf32>
    %c16_302 = arith.constant 16 : index
    %c56_303 = arith.constant 56 : index
    %343 = vector.load %arg7[%c16_302, %c56_303] : memref<32x72xf32, #tpu.memory_space<vmem>>, vector<4x8xf32>
    tpu.vector_store %arg7[%c16_302, %c56_303], %342 {strides = array<i32>} : memref<32x72xf32, #tpu.memory_space<vmem>>, vector<4x8xf32>,
    %344 = vector.extract_strided_slice %255 {offsets = [50, 0], sizes = [4, 8], strides = [1, 1]} : vector<72x8xf32> to vector<4x8xf32>
    %c16_304 = arith.constant 16 : index
    %c64_305 = arith.constant 64 : index
    %345 = vector.load %arg7[%c16_304, %c64_305] : memref<32x72xf32, #tpu.memory_space<vmem>>, vector<4x8xf32>
    tpu.vector_store %arg7[%c16_304, %c64_305], %344 {strides = array<i32>} : memref<32x72xf32, #tpu.memory_space<vmem>>, vector<4x8xf32>,
    %346 = vector.extract_strided_slice %255 {offsets = [42, 0], sizes = [4, 8], strides = [1, 1]} : vector<72x8xf32> to vector<4x8xf32>
    %c20_306 = arith.constant 20 : index
    %c0_307 = arith.constant 0 : index
    %347 = vector.load %arg7[%c20_306, %c0_307] : memref<32x72xf32, #tpu.memory_space<vmem>>, vector<4x8xf32>
    tpu.vector_store %arg7[%c20_306, %c0_307], %346 {strides = array<i32>} : memref<32x72xf32, #tpu.memory_space<vmem>>, vector<4x8xf32>,
    %348 = vector.extract_strided_slice %255 {offsets = [43, 0], sizes = [4, 8], strides = [1, 1]} : vector<72x8xf32> to vector<4x8xf32>
    %c20_308 = arith.constant 20 : index
    %c8_309 = arith.constant 8 : index
    %349 = vector.load %arg7[%c20_308, %c8_309] : memref<32x72xf32, #tpu.memory_space<vmem>>, vector<4x8xf32>
    tpu.vector_store %arg7[%c20_308, %c8_309], %348 {strides = array<i32>} : memref<32x72xf32, #tpu.memory_space<vmem>>, vector<4x8xf32>,
    %350 = vector.extract_strided_slice %255 {offsets = [44, 0], sizes = [4, 8], strides = [1, 1]} : vector<72x8xf32> to vector<4x8xf32>
    %c20_310 = arith.constant 20 : index
    %c16_311 = arith.constant 16 : index
    %351 = vector.load %arg7[%c20_310, %c16_311] : memref<32x72xf32, #tpu.memory_space<vmem>>, vector<4x8xf32>
    tpu.vector_store %arg7[%c20_310, %c16_311], %350 {strides = array<i32>} : memref<32x72xf32, #tpu.memory_space<vmem>>, vector<4x8xf32>,
    %352 = vector.extract_strided_slice %255 {offsets = [48, 0], sizes = [4, 8], strides = [1, 1]} : vector<72x8xf32> to vector<4x8xf32>
    %c20_312 = arith.constant 20 : index
    %c24_313 = arith.constant 24 : index
    %353 = vector.load %arg7[%c20_312, %c24_313] : memref<32x72xf32, #tpu.memory_space<vmem>>, vector<4x8xf32>
    tpu.vector_store %arg7[%c20_312, %c24_313], %352 {strides = array<i32>} : memref<32x72xf32, #tpu.memory_space<vmem>>, vector<4x8xf32>,
    %354 = vector.extract_strided_slice %255 {offsets = [49, 0], sizes = [4, 8], strides = [1, 1]} : vector<72x8xf32> to vector<4x8xf32>
    %c20_314 = arith.constant 20 : index
    %c32_315 = arith.constant 32 : index
    %355 = vector.load %arg7[%c20_314, %c32_315] : memref<32x72xf32, #tpu.memory_space<vmem>>, vector<4x8xf32>
    tpu.vector_store %arg7[%c20_314, %c32_315], %354 {strides = array<i32>} : memref<32x72xf32, #tpu.memory_space<vmem>>, vector<4x8xf32>,
    %356 = vector.extract_strided_slice %255 {offsets = [50, 0], sizes = [4, 8], strides = [1, 1]} : vector<72x8xf32> to vector<4x8xf32>
    %c20_316 = arith.constant 20 : index
    %c40_317 = arith.constant 40 : index
    %357 = vector.load %arg7[%c20_316, %c40_317] : memref<32x72xf32, #tpu.memory_space<vmem>>, vector<4x8xf32>
    tpu.vector_store %arg7[%c20_316, %c40_317], %356 {strides = array<i32>} : memref<32x72xf32, #tpu.memory_space<vmem>>, vector<4x8xf32>,
    %358 = vector.extract_strided_slice %255 {offsets = [54, 0], sizes = [4, 8], strides = [1, 1]} : vector<72x8xf32> to vector<4x8xf32>
    %c20_318 = arith.constant 20 : index
    %c48_319 = arith.constant 48 : index
    %359 = vector.load %arg7[%c20_318, %c48_319] : memref<32x72xf32, #tpu.memory_space<vmem>>, vector<4x8xf32>
    tpu.vector_store %arg7[%c20_318, %c48_319], %358 {strides = array<i32>} : memref<32x72xf32, #tpu.memory_space<vmem>>, vector<4x8xf32>,
    %360 = vector.extract_strided_slice %255 {offsets = [55, 0], sizes = [4, 8], strides = [1, 1]} : vector<72x8xf32> to vector<4x8xf32>
    %c20_320 = arith.constant 20 : index
    %c56_321 = arith.constant 56 : index
    %361 = vector.load %arg7[%c20_320, %c56_321] : memref<32x72xf32, #tpu.memory_space<vmem>>, vector<4x8xf32>
    tpu.vector_store %arg7[%c20_320, %c56_321], %360 {strides = array<i32>} : memref<32x72xf32, #tpu.memory_space<vmem>>, vector<4x8xf32>,
    %362 = vector.extract_strided_slice %255 {offsets = [56, 0], sizes = [4, 8], strides = [1, 1]} : vector<72x8xf32> to vector<4x8xf32>
    %c20_322 = arith.constant 20 : index
    %c64_323 = arith.constant 64 : index
    %363 = vector.load %arg7[%c20_322, %c64_323] : memref<32x72xf32, #tpu.memory_space<vmem>>, vector<4x8xf32>
    tpu.vector_store %arg7[%c20_322, %c64_323], %362 {strides = array<i32>} : memref<32x72xf32, #tpu.memory_space<vmem>>, vector<4x8xf32>,
    %364 = vector.extract_strided_slice %255 {offsets = [48, 0], sizes = [4, 8], strides = [1, 1]} : vector<72x8xf32> to vector<4x8xf32>
    %c24_324 = arith.constant 24 : index
    %c0_325 = arith.constant 0 : index
    %365 = vector.load %arg7[%c24_324, %c0_325] : memref<32x72xf32, #tpu.memory_space<vmem>>, vector<4x8xf32>
    tpu.vector_store %arg7[%c24_324, %c0_325], %364 {strides = array<i32>} : memref<32x72xf32, #tpu.memory_space<vmem>>, vector<4x8xf32>,
    %366 = vector.extract_strided_slice %255 {offsets = [49, 0], sizes = [4, 8], strides = [1, 1]} : vector<72x8xf32> to vector<4x8xf32>
    %c24_326 = arith.constant 24 : index
    %c8_327 = arith.constant 8 : index
    %367 = vector.load %arg7[%c24_326, %c8_327] : memref<32x72xf32, #tpu.memory_space<vmem>>, vector<4x8xf32>
    tpu.vector_store %arg7[%c24_326, %c8_327], %366 {strides = array<i32>} : memref<32x72xf32, #tpu.memory_space<vmem>>, vector<4x8xf32>,
    %368 = vector.extract_strided_slice %255 {offsets = [50, 0], sizes = [4, 8], strides = [1, 1]} : vector<72x8xf32> to vector<4x8xf32>
    %c24_328 = arith.constant 24 : index
    %c16_329 = arith.constant 16 : index
    %369 = vector.load %arg7[%c24_328, %c16_329] : memref<32x72xf32, #tpu.memory_space<vmem>>, vector<4x8xf32>
    tpu.vector_store %arg7[%c24_328, %c16_329], %368 {strides = array<i32>} : memref<32x72xf32, #tpu.memory_space<vmem>>, vector<4x8xf32>,
    %370 = vector.extract_strided_slice %255 {offsets = [54, 0], sizes = [4, 8], strides = [1, 1]} : vector<72x8xf32> to vector<4x8xf32>
    %c24_330 = arith.constant 24 : index
    %c24_331 = arith.constant 24 : index
    %371 = vector.load %arg7[%c24_330, %c24_331] : memref<32x72xf32, #tpu.memory_space<vmem>>, vector<4x8xf32>
    tpu.vector_store %arg7[%c24_330, %c24_331], %370 {strides = array<i32>} : memref<32x72xf32, #tpu.memory_space<vmem>>, vector<4x8xf32>,
    %372 = vector.extract_strided_slice %255 {offsets = [55, 0], sizes = [4, 8], strides = [1, 1]} : vector<72x8xf32> to vector<4x8xf32>
    %c24_332 = arith.constant 24 : index
    %c32_333 = arith.constant 32 : index
    %373 = vector.load %arg7[%c24_332, %c32_333] : memref<32x72xf32, #tpu.memory_space<vmem>>, vector<4x8xf32>
    tpu.vector_store %arg7[%c24_332, %c32_333], %372 {strides = array<i32>} : memref<32x72xf32, #tpu.memory_space<vmem>>, vector<4x8xf32>,
    %374 = vector.extract_strided_slice %255 {offsets = [56, 0], sizes = [4, 8], strides = [1, 1]} : vector<72x8xf32> to vector<4x8xf32>
    %c24_334 = arith.constant 24 : index
    %c40_335 = arith.constant 40 : index
    %375 = vector.load %arg7[%c24_334, %c40_335] : memref<32x72xf32, #tpu.memory_space<vmem>>, vector<4x8xf32>
    tpu.vector_store %arg7[%c24_334, %c40_335], %374 {strides = array<i32>} : memref<32x72xf32, #tpu.memory_space<vmem>>, vector<4x8xf32>,
    %376 = vector.extract_strided_slice %255 {offsets = [60, 0], sizes = [4, 8], strides = [1, 1]} : vector<72x8xf32> to vector<4x8xf32>
    %c24_336 = arith.constant 24 : index
    %c48_337 = arith.constant 48 : index
    %377 = vector.load %arg7[%c24_336, %c48_337] : memref<32x72xf32, #tpu.memory_space<vmem>>, vector<4x8xf32>
    tpu.vector_store %arg7[%c24_336, %c48_337], %376 {strides = array<i32>} : memref<32x72xf32, #tpu.memory_space<vmem>>, vector<4x8xf32>,
    %378 = vector.extract_strided_slice %255 {offsets = [61, 0], sizes = [4, 8], strides = [1, 1]} : vector<72x8xf32> to vector<4x8xf32>
    %c24_338 = arith.constant 24 : index
    %c56_339 = arith.constant 56 : index
    %379 = vector.load %arg7[%c24_338, %c56_339] : memref<32x72xf32, #tpu.memory_space<vmem>>, vector<4x8xf32>
    tpu.vector_store %arg7[%c24_338, %c56_339], %378 {strides = array<i32>} : memref<32x72xf32, #tpu.memory_space<vmem>>, vector<4x8xf32>,
    %380 = vector.extract_strided_slice %255 {offsets = [62, 0], sizes = [4, 8], strides = [1, 1]} : vector<72x8xf32> to vector<4x8xf32>
    %c24_340 = arith.constant 24 : index
    %c64_341 = arith.constant 64 : index
    %381 = vector.load %arg7[%c24_340, %c64_341] : memref<32x72xf32, #tpu.memory_space<vmem>>, vector<4x8xf32>
    tpu.vector_store %arg7[%c24_340, %c64_341], %380 {strides = array<i32>} : memref<32x72xf32, #tpu.memory_space<vmem>>, vector<4x8xf32>,
    %382 = vector.extract_strided_slice %255 {offsets = [54, 0], sizes = [4, 8], strides = [1, 1]} : vector<72x8xf32> to vector<4x8xf32>
    %c28_342 = arith.constant 28 : index
    %c0_343 = arith.constant 0 : index
    %383 = vector.load %arg7[%c28_342, %c0_343] : memref<32x72xf32, #tpu.memory_space<vmem>>, vector<4x8xf32>
    tpu.vector_store %arg7[%c28_342, %c0_343], %382 {strides = array<i32>} : memref<32x72xf32, #tpu.memory_space<vmem>>, vector<4x8xf32>,
    %384 = vector.extract_strided_slice %255 {offsets = [55, 0], sizes = [4, 8], strides = [1, 1]} : vector<72x8xf32> to vector<4x8xf32>
    %c28_344 = arith.constant 28 : index
    %c8_345 = arith.constant 8 : index
    %385 = vector.load %arg7[%c28_344, %c8_345] : memref<32x72xf32, #tpu.memory_space<vmem>>, vector<4x8xf32>
    tpu.vector_store %arg7[%c28_344, %c8_345], %384 {strides = array<i32>} : memref<32x72xf32, #tpu.memory_space<vmem>>, vector<4x8xf32>,
    %386 = vector.extract_strided_slice %255 {offsets = [56, 0], sizes = [4, 8], strides = [1, 1]} : vector<72x8xf32> to vector<4x8xf32>
    %c28_346 = arith.constant 28 : index
    %c16_347 = arith.constant 16 : index
    %387 = vector.load %arg7[%c28_346, %c16_347] : memref<32x72xf32, #tpu.memory_space<vmem>>, vector<4x8xf32>
    tpu.vector_store %arg7[%c28_346, %c16_347], %386 {strides = array<i32>} : memref<32x72xf32, #tpu.memory_space<vmem>>, vector<4x8xf32>,
    %388 = vector.extract_strided_slice %255 {offsets = [60, 0], sizes = [4, 8], strides = [1, 1]} : vector<72x8xf32> to vector<4x8xf32>
    %c28_348 = arith.constant 28 : index
    %c24_349 = arith.constant 24 : index
    %389 = vector.load %arg7[%c28_348, %c24_349] : memref<32x72xf32, #tpu.memory_space<vmem>>, vector<4x8xf32>
    tpu.vector_store %arg7[%c28_348, %c24_349], %388 {strides = array<i32>} : memref<32x72xf32, #tpu.memory_space<vmem>>, vector<4x8xf32>,
    %390 = vector.extract_strided_slice %255 {offsets = [61, 0], sizes = [4, 8], strides = [1, 1]} : vector<72x8xf32> to vector<4x8xf32>
    %c28_350 = arith.constant 28 : index
    %c32_351 = arith.constant 32 : index
    %391 = vector.load %arg7[%c28_350, %c32_351] : memref<32x72xf32, #tpu.memory_space<vmem>>, vector<4x8xf32>
    tpu.vector_store %arg7[%c28_350, %c32_351], %390 {strides = array<i32>} : memref<32x72xf32, #tpu.memory_space<vmem>>, vector<4x8xf32>,
    %392 = vector.extract_strided_slice %255 {offsets = [62, 0], sizes = [4, 8], strides = [1, 1]} : vector<72x8xf32> to vector<4x8xf32>
    %c28_352 = arith.constant 28 : index
    %c40_353 = arith.constant 40 : index
    %393 = vector.load %arg7[%c28_352, %c40_353] : memref<32x72xf32, #tpu.memory_space<vmem>>, vector<4x8xf32>
    tpu.vector_store %arg7[%c28_352, %c40_353], %392 {strides = array<i32>} : memref<32x72xf32, #tpu.memory_space<vmem>>, vector<4x8xf32>,
    %394 = vector.extract_strided_slice %255 {offsets = [66, 0], sizes = [4, 8], strides = [1, 1]} : vector<72x8xf32> to vector<4x8xf32>
    %c28_354 = arith.constant 28 : index
    %c48_355 = arith.constant 48 : index
    %395 = vector.load %arg7[%c28_354, %c48_355] : memref<32x72xf32, #tpu.memory_space<vmem>>, vector<4x8xf32>
    tpu.vector_store %arg7[%c28_354, %c48_355], %394 {strides = array<i32>} : memref<32x72xf32, #tpu.memory_space<vmem>>, vector<4x8xf32>,
    %396 = vector.extract_strided_slice %255 {offsets = [67, 0], sizes = [4, 8], strides = [1, 1]} : vector<72x8xf32> to vector<4x8xf32>
    %c28_356 = arith.constant 28 : index
    %c56_357 = arith.constant 56 : index
    %397 = vector.load %arg7[%c28_356, %c56_357] : memref<32x72xf32, #tpu.memory_space<vmem>>, vector<4x8xf32>
    tpu.vector_store %arg7[%c28_356, %c56_357], %396 {strides = array<i32>} : memref<32x72xf32, #tpu.memory_space<vmem>>, vector<4x8xf32>,
    %398 = vector.extract_strided_slice %255 {offsets = [68, 0], sizes = [4, 8], strides = [1, 1]} : vector<72x8xf32> to vector<4x8xf32>
    %c28_358 = arith.constant 28 : index
    %c64_359 = arith.constant 64 : index
    %399 = vector.load %arg7[%c28_358, %c64_359] : memref<32x72xf32, #tpu.memory_space<vmem>>, vector<4x8xf32>
    tpu.vector_store %arg7[%c28_358, %c64_359], %398 {strides = array<i32>} : memref<32x72xf32, #tpu.memory_space<vmem>>, vector<4x8xf32>,
    %c0_360 = arith.constant 0 : index
    %c0_361 = arith.constant 0 : index
    %400 = vector.load %arg7[%c0_360, %c0_361] : memref<32x72xf32, #tpu.memory_space<vmem>>, vector<32x72xf32>
    %c0_362 = arith.constant 0 : index
    %c0_363 = arith.constant 0 : index
    %401 = vector.load %arg2[%c0_362, %c0_363] : memref<72x8xf32, #tpu.memory_space<vmem>>, vector<72x8xf32>
    %cst_364 = arith.constant dense<0.000000e+00> : vector<32x8xf32>
    %402 = tpu.matmul %400, %401, %cst_364 {dimension_numbers = #tpu.dot_dimension_numbers<[1], [0], [0], [1], [0, 0, 1, 1], [], []>} : vector<32x72xf32>, vector<72x8xf32>, vector<32x8xf32> -> vector<32x8xf32>
    %c0_365 = arith.constant 0 : index
    %c0_366 = arith.constant 0 : index
    %403 = vector.load %arg4[%c0_365, %c0_366] : memref<2x8xf32, #tpu.memory_space<vmem>>, vector<2x8xf32>
    %404 = vector.extract_strided_slice %403 {offsets = [0, 0], sizes = [1, 8], strides = [1, 1]} : vector<2x8xf32> to vector<1x8xf32>
    %405 = vector.extract_strided_slice %403 {offsets = [1, 0], sizes = [1, 8], strides = [1, 1]} : vector<2x8xf32> to vector<1x8xf32>
    %cst_367 = arith.constant dense<0.000000e+00> : vector<8xf32>
    %406 = vector.multi_reduction <add>, %402, %cst_367 [0] : vector<32x8xf32> to vector<8xf32>
    %407 = vector.shape_cast %406 : vector<8xf32> to vector<1x8xf32>
    %cst_368 = arith.constant 3.200000e+01 : f32
    %408 = vector.broadcast %cst_368 : f32 to vector<1x8xf32>
    %409 = arith.divf %407, %408 : vector<1x8xf32>
    %410 = vector.broadcast %409 : vector<1x8xf32> to vector<32x8xf32>
    %411 = arith.subf %402, %410 : vector<32x8xf32>
    %412 = arith.mulf %411, %411 : vector<32x8xf32>
    %cst_369 = arith.constant dense<0.000000e+00> : vector<8xf32>
    %413 = vector.multi_reduction <add>, %412, %cst_369 [0] : vector<32x8xf32> to vector<8xf32>
    %414 = vector.shape_cast %413 : vector<8xf32> to vector<1x8xf32>
    %cst_370 = arith.constant 3.200000e+01 : f32
    %415 = vector.broadcast %cst_370 : f32 to vector<1x8xf32>
    %416 = arith.divf %414, %415 : vector<1x8xf32>
    %cst_371 = arith.constant 9.99999974E-6 : f32
    %417 = vector.broadcast %cst_371 : f32 to vector<1x8xf32>
    %418 = arith.addf %416, %417 : vector<1x8xf32>
    %419 = math.rsqrt %418 : vector<1x8xf32>
    %420 = arith.mulf %404, %419 : vector<1x8xf32>
    %421 = vector.broadcast %420 : vector<1x8xf32> to vector<32x8xf32>
    %422 = arith.mulf %402, %421 : vector<32x8xf32>
    %423 = arith.mulf %409, %420 : vector<1x8xf32>
    %424 = arith.subf %405, %423 : vector<1x8xf32>
    %425 = vector.broadcast %424 : vector<1x8xf32> to vector<32x8xf32>
    %426 = arith.addf %422, %425 : vector<32x8xf32>
    %cst_372 = arith.constant 0.000000e+00 : f32
    %427 = vector.broadcast %cst_372 : f32 to vector<32x8xf32>
    %428 = arith.maximumf %426, %427 : vector<32x8xf32>
    %c0_373 = arith.constant 0 : index
    %c0_374 = arith.constant 0 : index
    %429 = vector.load %arg5[%c0_373, %c0_374] : memref<32x8xf32, #tpu.memory_space<vmem>>, vector<32x8xf32>
    tpu.vector_store %arg5[%c0_373, %c0_374], %428 {strides = array<i32>} : memref<32x8xf32, #tpu.memory_space<vmem>>, vector<32x8xf32>,
    return
  }
}

</mosaic_0001>

<llo_original>
// kernel: down_along_forward.1
$region0: #{down_along_forward.1}
  #allocation0 [shape = 'u32[]', space=smem, size = 0x4, offset = 0x4, fixed_abs, tag = 'smem constant byte address 0x4 - core index']
  #allocation1 [shape = 'u32[72,128]{1,0:T(1,128)}', space=vmem, size = 0x9000, scoped, tag = 'internal scratch']
  #allocation2 [shape = 'f32[72,36]{1,0:T(8,128)}', space=vmem, size = 0x9000, scoped, tag = 'scratch operand']
  #allocation3 [shape = 'f32[32,72]{1,0:T(8,128)}', space=vmem, size = 0x4000, scoped, tag = 'scratch operand']
  %s0 = inlined_call_operand.vmem [shape: f32[4,128,4], index: 0, kind: input, shape index: {}]
  %s1 = inlined_call_operand.vmem [shape: f32[36,8], index: 1, kind: input, shape index: {}]
  %s2 = inlined_call_operand.vmem [shape: f32[72,8], index: 2, kind: input, shape index: {}]
  %s3 = inlined_call_operand.vmem [shape: f32[2,8], index: 3, kind: input, shape index: {}]
  %s4 = inlined_call_operand.vmem [shape: f32[2,8], index: 4, kind: input, shape index: {}]
  %s5 = inlined_call_operand.hbm [shape: f32[32,8], index: 5, kind: output, shape index: {}]
  %s6 = sld [smem:[#allocation0]]
  $region30: #{down_along_forward.1} parent=0
    _
  %s8 = ssub.s32 1, %s6
  %s9 = scalar_select 0, %s8, %s6
  $region1: #{down_along_forward.1} parent=0
    #allocation4 [shape = 'u8[16384]{0}', space=vmem, size = 0x4000, scoped, tag = 'output window, operand 0, single buffered']
    #allocation5 [shape = 's32[1]{0}', space=sflag, size = 0x4, scoped, tag = 'scoped memory for down_along_forward.1']
    %10 = vsyncpa [#allocation5], 0
    // Predicated region
    $region2: #{down_along_forward.1} parent=1 // pred_check
      _
    $region3: #{down_along_forward.1} parent=1 // pred_check_branch
      %12 = sbr.rel (0) target = $region5
    $region4: #{down_along_forward.1} parent=1 // pred_region
      _
    $region5: #{down_along_forward.1} parent=1 // pred_fallthru
      _
    // Predicated region
    $region6: #{down_along_forward.1} parent=1 // pred_check
      _
    $region7: #{down_along_forward.1} parent=1 // pred_check_branch
      %14 = sbr.rel (0) target = $region9
    $region8: #{down_along_forward.1} parent=1 // pred_region
      _
    $region9: #{down_along_forward.1} parent=1 // pred_fallthru
      _
    // Predicated region
    $region10: #{down_along_forward.1} parent=1 // pred_check
      _
    $region11: #{down_along_forward.1} parent=1 // pred_check_branch
      %16 = sbr.rel (0) target = $region13
    $region12: #{down_along_forward.1} parent=1 // pred_region
      _
    $region13: #{down_along_forward.1} parent=1 // pred_fallthru
      _
    // Predicated region
    $region14: #{down_along_forward.1} parent=1 // pred_check
      _
    $region15: #{down_along_forward.1} parent=1 // pred_check_branch
      %18 = sbr.rel (0) target = $region17
    $region16: #{down_along_forward.1} parent=1 // pred_region
      _
    $region17: #{down_along_forward.1} parent=1 // pred_fallthru
      _
    // Predicated region
    $region18: #{down_along_forward.1} parent=1 // pred_check
      _
    $region19: #{down_along_forward.1} parent=1 // pred_check_branch
      %20 = sbr.rel (0) target = $region21
    $region20: #{down_along_forward.1} parent=1 // pred_region
      _
    $region21: #{down_along_forward.1} parent=1 // pred_fallthru
      _
    %v21 = vld [vmem:[%s0] sm:$0xff]
    %v22 = vld [vmem:[%s0 + $0x8] sm:$0xff]
    %v23 = vld [vmem:[%s0 + $0x10] sm:$0xff]
    %v24 = vld [vmem:[%s0 + $0x18] sm:$0xff]
    %v25 = vld [vmem:[%s0 + $0x20] sm:$0xff]
    %v26 = vld [vmem:[%s0 + $0x28] sm:$0xff]
    %v27 = vld [vmem:[%s0 + $0x30] sm:$0xff]
    %v28 = vld [vmem:[%s0 + $0x38] sm:$0xff]
    %v29 = vld [vmem:[%s0 + $0x40] sm:$0xff]
    %v30 = vld [vmem:[%s0 + $0x48] sm:$0xff]
    %v31 = vld [vmem:[%s0 + $0x50] sm:$0xff]
    %v32 = vld [vmem:[%s0 + $0x58] sm:$0xff]
    %v33 = vld [vmem:[%s0 + $0x60] sm:$0xff]
    %v34 = vld [vmem:[%s0 + $0x68] sm:$0xff]
    %v35 = vld [vmem:[%s0 + $0x70] sm:$0xff]
    %v36 = vld [vmem:[%s0 + $0x78] sm:$0xff]
    %s37 = scalar_lea.vmem %s0, 128
    %v38 = vld [vmem:[%s37] sm:$0xff]
    %v39 = vld [vmem:[%s37 + $0x8] sm:$0xff]
    %v40 = vld [vmem:[%s37 + $0x10] sm:$0xff]
    %v41 = vld [vmem:[%s37 + $0x18] sm:$0xff]
    %v42 = vld [vmem:[%s37 + $0x20] sm:$0xff]
    %v43 = vld [vmem:[%s37 + $0x28] sm:$0xff]
    %v44 = vld [vmem:[%s37 + $0x30] sm:$0xff]
    %v45 = vld [vmem:[%s37 + $0x38] sm:$0xff]
    %v46 = vld [vmem:[%s37 + $0x40] sm:$0xff]
    %v47 = vld [vmem:[%s37 + $0x48] sm:$0xff]
    %v48 = vld [vmem:[%s37 + $0x50] sm:$0xff]
    %v49 = vld [vmem:[%s37 + $0x58] sm:$0xff]
    %v50 = vld [vmem:[%s37 + $0x60] sm:$0xff]
    %v51 = vld [vmem:[%s37 + $0x68] sm:$0xff]
    %v52 = vld [vmem:[%s37 + $0x70] sm:$0xff]
    %v53 = vld [vmem:[%s37 + $0x78] sm:$0xff]
    %v54 = vmax.f32 %v21, %v38
    %v55 = vmax.f32 %v22, %v39
    %v56 = vmax.f32 %v23, %v40
    %v57 = vmax.f32 %v24, %v41
    %v58 = vmax.f32 %v25, %v42
    %v59 = vmax.f32 %v26, %v43
    %v60 = vmax.f32 %v27, %v44
    %v61 = vmax.f32 %v28, %v45
    %v62 = vmax.f32 %v29, %v46
    %v63 = vmax.f32 %v30, %v47
    %v64 = vmax.f32 %v31, %v48
    %v65 = vmax.f32 %v32, %v49
    %v66 = vmax.f32 %v33, %v50
    %v67 = vmax.f32 %v34, %v51
    %v68 = vmax.f32 %v35, %v52
    %v69 = vmax.f32 %v36, %v53
    %s70 = scalar_lea.vmem %s0, 256
    %v71 = vld [vmem:[%s70] sm:$0xff]
    %v72 = vld [vmem:[%s70 + $0x8] sm:$0xff]
    %v73 = vld [vmem:[%s70 + $0x10] sm:$0xff]
    %v74 = vld [vmem:[%s70 + $0x18] sm:$0xff]
    %v75 = vld [vmem:[%s70 + $0x20] sm:$0xff]
    %v76 = vld [vmem:[%s70 + $0x28] sm:$0xff]
    %v77 = vld [vmem:[%s70 + $0x30] sm:$0xff]
    %v78 = vld [vmem:[%s70 + $0x38] sm:$0xff]
    %v79 = vld [vmem:[%s70 + $0x40] sm:$0xff]
    %v80 = vld [vmem:[%s70 + $0x48] sm:$0xff]
    %v81 = vld [vmem:[%s70 + $0x50] sm:$0xff]
    %v82 = vld [vmem:[%s70 + $0x58] sm:$0xff]
    %v83 = vld [vmem:[%s70 + $0x60] sm:$0xff]
    %v84 = vld [vmem:[%s70 + $0x68] sm:$0xff]
    %v85 = vld [vmem:[%s70 + $0x70] sm:$0xff]
    %v86 = vld [vmem:[%s70 + $0x78] sm:$0xff]
    %s87 = scalar_lea.vmem %s0, 384
    %v88 = vld [vmem:[%s87] sm:$0xff]
    %v89 = vld [vmem:[%s87 + $0x8] sm:$0xff]
    %v90 = vld [vmem:[%s87 + $0x10] sm:$0xff]
    %v91 = vld [vmem:[%s87 + $0x18] sm:$0xff]
    %v92 = vld [vmem:[%s87 + $0x20] sm:$0xff]
    %v93 = vld [vmem:[%s87 + $0x28] sm:$0xff]
    %v94 = vld [vmem:[%s87 + $0x30] sm:$0xff]
    %v95 = vld [vmem:[%s87 + $0x38] sm:$0xff]
    %v96 = vld [vmem:[%s87 + $0x40] sm:$0xff]
    %v97 = vld [vmem:[%s87 + $0x48] sm:$0xff]
    %v98 = vld [vmem:[%s87 + $0x50] sm:$0xff]
    %v99 = vld [vmem:[%s87 + $0x58] sm:$0xff]
    %v100 = vld [vmem:[%s87 + $0x60] sm:$0xff]
    %v101 = vld [vmem:[%s87 + $0x68] sm:$0xff]
    %v102 = vld [vmem:[%s87 + $0x70] sm:$0xff]
    %v103 = vld [vmem:[%s87 + $0x78] sm:$0xff]
    %v104 = vmax.f32 %v71, %v88
    %v105 = vmax.f32 %v72, %v89
    %v106 = vmax.f32 %v73, %v90
    %v107 = vmax.f32 %v74, %v91
    %v108 = vmax.f32 %v75, %v92
    %v109 = vmax.f32 %v76, %v93
    %v110 = vmax.f32 %v77, %v94
    %v111 = vmax.f32 %v78, %v95
    %v112 = vmax.f32 %v79, %v96
    %v113 = vmax.f32 %v80, %v97
    %v114 = vmax.f32 %v81, %v98
    %v115 = vmax.f32 %v82, %v99
    %v116 = vmax.f32 %v83, %v100
    %v117 = vmax.f32 %v84, %v101
    %v118 = vmax.f32 %v85, %v102
    %v119 = vmax.f32 %v86, %v103
    %v120 = vmax.f32 %v54, %v104
    %v121 = vmax.f32 %v55, %v105
    %v122 = vmax.f32 %v56, %v106
    %v123 = vmax.f32 %v57, %v107
    %v124 = vmax.f32 %v58, %v108
    %v125 = vmax.f32 %v59, %v109
    %v126 = vmax.f32 %v60, %v110
    %v127 = vmax.f32 %v61, %v111
    %v128 = vmax.f32 %v62, %v112
    %v129 = vmax.f32 %v63, %v113
    %v130 = vmax.f32 %v64, %v114
    %v131 = vmax.f32 %v65, %v115
    %v132 = vmax.f32 %v66, %v116
    %v133 = vmax.f32 %v67, %v117
    %v134 = vmax.f32 %v68, %v118
    %v135 = vmax.f32 %v69, %v119
    %vm136 = vcmask 29696
    %137 = vst.msk [vmem:[#allocation2] sm:$0x3f] %vm136, %v120
    %139 = vrot.lane.b32.xlu0 %v120, 4
    %v140 = vpop.permute.xlu0 %139
    %vm142 = vcmask 63521
    %143 = vst.msk [vmem:[#allocation2 - $0x1] sm:$0x7e] %vm142, %v140
    %144 = vrot.lane.b32.xlu0 %v120, 8
    %v145 = vpop.permute.xlu0 %144
    %vm147 = vcmask 97346
    %148 = vst.msk [vmem:[#allocation2 - $0x2] sm:$0xfc] %vm147, %v145
    %150 = vrot.lane.b32.xlu0 %v121, 12
    %v151 = vpop.permute.xlu0 %150
    %vm153 = vcmask 128096
    %154 = vst.msk [vmem:[#allocation2] sm:$0x3f] %vm153, %v151
    %155 = vrot.lane.b32.xlu0 %v121, 16
    %v156 = vpop.permute.xlu0 %155
    %vm158 = vcmask 161921
    %159 = vst.msk [vmem:[#allocation2 - $0x1] sm:$0x7e] %vm158, %v156
    %160 = vrot.lane.b32.xlu0 %v121, 20
    %v161 = vpop.permute.xlu0 %160
    %vm163 = vcmask 195746
    %164 = vst.msk [vmem:[#allocation2 - $0x2] sm:$0xfc] %vm163, %v161
    %166 = vrot.lane.b32.xlu0 %v122, 24
    %v167 = vpop.permute.xlu0 %166
    %vm169 = vcmask 226496
    %170 = vst.msk [vmem:[#allocation2] sm:$0x3f] %vm169, %v167
    %171 = vrot.lane.b32.xlu0 %v122, 28
    %v172 = vpop.permute.xlu0 %171
    %vm174 = vcmask 260321
    %175 = vst.msk [vmem:[#allocation2 - $0x1] sm:$0x7e] %vm174, %v172
    %176 = vrot.lane.b32.xlu0 %v122, 32
    %v177 = vpop.permute.xlu0 %176
    %vm179 = vcmask 294146
    %180 = vst.msk [vmem:[#allocation2 - $0x2] sm:$0xfc] %vm179, %v177
    %181 = vst.msk [vmem:[#allocation2 + $0x6] sm:$0x3f] %vm136, %v121
    %182 = vrot.lane.b32.xlu0 %v121, 4
    %v183 = vpop.permute.xlu0 %182
    %185 = vst.msk [vmem:[#allocation2 + $0x5] sm:$0x7e] %vm142, %v183
    %186 = vrot.lane.b32.xlu0 %v121, 8
    %v187 = vpop.permute.xlu0 %186
    %189 = vst.msk [vmem:[#allocation2 + $0x4] sm:$0xfc] %vm147, %v187
    %190 = vrot.lane.b32.xlu0 %v122, 12
    %v191 = vpop.permute.xlu0 %190
    %193 = vst.msk [vmem:[#allocation2 + $0x6] sm:$0x3f] %vm153, %v191
    %194 = vrot.lane.b32.xlu0 %v122, 16
    %v195 = vpop.permute.xlu0 %194
    %197 = vst.msk [vmem:[#allocation2 + $0x5] sm:$0x7e] %vm158, %v195
    %198 = vrot.lane.b32.xlu0 %v122, 20
    %v199 = vpop.permute.xlu0 %198
    %201 = vst.msk [vmem:[#allocation2 + $0x4] sm:$0xfc] %vm163, %v199
    %203 = vrot.lane.b32.xlu0 %v123, 24
    %v204 = vpop.permute.xlu0 %203
    %206 = vst.msk [vmem:[#allocation2 + $0x6] sm:$0x3f] %vm169, %v204
    %207 = vrot.lane.b32.xlu0 %v123, 28
    %v208 = vpop.permute.xlu0 %207
    %210 = vst.msk [vmem:[#allocation2 + $0x5] sm:$0x7e] %vm174, %v208
    %211 = vrot.lane.b32.xlu0 %v123, 32
    %v212 = vpop.permute.xlu0 %211
    %214 = vst.msk [vmem:[#allocation2 + $0x4] sm:$0xfc] %vm179, %v212
    %215 = vst.msk [vmem:[#allocation2 + $0xc] sm:$0x3f] %vm136, %v122
    %216 = vrot.lane.b32.xlu0 %v122, 4
    %v217 = vpop.permute.xlu0 %216
    %219 = vst.msk [vmem:[#allocation2 + $0xb] sm:$0x7e] %vm142, %v217
    %220 = vrot.lane.b32.xlu0 %v122, 8
    %v221 = vpop.permute.xlu0 %220
    %223 = vst.msk [vmem:[#allocation2 + $0xa] sm:$0xfc] %vm147, %v221
    %224 = vrot.lane.b32.xlu0 %v123, 12
    %v225 = vpop.permute.xlu0 %224
    %227 = vst.msk [vmem:[#allocation2 + $0xc] sm:$0x3f] %vm153, %v225
    %228 = vrot.lane.b32.xlu0 %v123, 16
    %v229 = vpop.permute.xlu0 %228
    %231 = vst.msk [vmem:[#allocation2 + $0xb] sm:$0x7e] %vm158, %v229
    %232 = vrot.lane.b32.xlu0 %v123, 20
    %v233 = vpop.permute.xlu0 %232
    %235 = vst.msk [vmem:[#allocation2 + $0xa] sm:$0xfc] %vm163, %v233
    %237 = vrot.lane.b32.xlu0 %v124, 24
    %v238 = vpop.permute.xlu0 %237
    %240 = vst.msk [vmem:[#allocation2 + $0xc] sm:$0x3f] %vm169, %v238
    %241 = vrot.lane.b32.xlu0 %v124, 28
    %v242 = vpop.permute.xlu0 %241
    %244 = vst.msk [vmem:[#allocation2 + $0xb] sm:$0x7e] %vm174, %v242
    %245 = vrot.lane.b32.xlu0 %v124, 32
    %v246 = vpop.permute.xlu0 %245
    %248 = vst.msk [vmem:[#allocation2 + $0xa] sm:$0xfc] %vm179, %v246
    %249 = vst.msk [vmem:[#allocation2 + $0x12] sm:$0x3f] %vm136, %v123
    %250 = vrot.lane.b32.xlu0 %v123, 4
    %v251 = vpop.permute.xlu0 %250
    %253 = vst.msk [vmem:[#allocation2 + $0x11] sm:$0x7e] %vm142, %v251
    %254 = vrot.lane.b32.xlu0 %v123, 8
    %v255 = vpop.permute.xlu0 %254
    %257 = vst.msk [vmem:[#allocation2 + $0x10] sm:$0xfc] %vm147, %v255
    %258 = vrot.lane.b32.xlu0 %v124, 12
    %v259 = vpop.permute.xlu0 %258
    %261 = vst.msk [vmem:[#allocation2 + $0x12] sm:$0x3f] %vm153, %v259
    %262 = vrot.lane.b32.xlu0 %v124, 16
    %v263 = vpop.permute.xlu0 %262
    %265 = vst.msk [vmem:[#allocation2 + $0x11] sm:$0x7e] %vm158, %v263
    %266 = vrot.lane.b32.xlu0 %v124, 20
    %v267 = vpop.permute.xlu0 %266
    %269 = vst.msk [vmem:[#allocation2 + $0x10] sm:$0xfc] %vm163, %v267
    %271 = vrot.lane.b32.xlu0 %v125, 24
    %v272 = vpop.permute.xlu0 %271
    %274 = vst.msk [vmem:[#allocation2 + $0x12] sm:$0x3f] %vm169, %v272
    %275 = vrot.lane.b32.xlu0 %v125, 28
    %v276 = vpop.permute.xlu0 %275
    %278 = vst.msk [vmem:[#allocation2 + $0x11] sm:$0x7e] %vm174, %v276
    %279 = vrot.lane.b32.xlu0 %v125, 32
    %v280 = vpop.permute.xlu0 %279
    %282 = vst.msk [vmem:[#allocation2 + $0x10] sm:$0xfc] %vm179, %v280
    %283 = vst.msk [vmem:[#allocation2 + $0x18] sm:$0x3f] %vm136, %v124
    %284 = vrot.lane.b32.xlu0 %v124, 4
    %v285 = vpop.permute.xlu0 %284
    %287 = vst.msk [vmem:[#allocation2 + $0x17] sm:$0x7e] %vm142, %v285
    %288 = vrot.lane.b32.xlu0 %v124, 8
    %v289 = vpop.permute.xlu0 %288
    %291 = vst.msk [vmem:[#allocation2 + $0x16] sm:$0xfc] %vm147, %v289
    %292 = vrot.lane.b32.xlu0 %v125, 12
    %v293 = vpop.permute.xlu0 %292
    %295 = vst.msk [vmem:[#allocation2 + $0x18] sm:$0x3f] %vm153, %v293
    %296 = vrot.lane.b32.xlu0 %v125, 16
    %v297 = vpop.permute.xlu0 %296
    %299 = vst.msk [vmem:[#allocation2 + $0x17] sm:$0x7e] %vm158, %v297
    %300 = vrot.lane.b32.xlu0 %v125, 20
    %v301 = vpop.permute.xlu0 %300
    %303 = vst.msk [vmem:[#allocation2 + $0x16] sm:$0xfc] %vm163, %v301
    %305 = vrot.lane.b32.xlu0 %v126, 24
    %v306 = vpop.permute.xlu0 %305
    %308 = vst.msk [vmem:[#allocation2 + $0x18] sm:$0x3f] %vm169, %v306
    %309 = vrot.lane.b32.xlu0 %v126, 28
    %v310 = vpop.permute.xlu0 %309
    %312 = vst.msk [vmem:[#allocation2 + $0x17] sm:$0x7e] %vm174, %v310
    %313 = vrot.lane.b32.xlu0 %v126, 32
    %v314 = vpop.permute.xlu0 %313
    %316 = vst.msk [vmem:[#allocation2 + $0x16] sm:$0xfc] %vm179, %v314
    %317 = vst.msk [vmem:[#allocation2 + $0x1e] sm:$0x3f] %vm136, %v125
    %318 = vrot.lane.b32.xlu0 %v125, 4
    %v319 = vpop.permute.xlu0 %318
    %321 = vst.msk [vmem:[#allocation2 + $0x1d] sm:$0x7e] %vm142, %v319
    %322 = vrot.lane.b32.xlu0 %v125, 8
    %v323 = vpop.permute.xlu0 %322
    %325 = vst.msk [vmem:[#allocation2 + $0x1c] sm:$0xfc] %vm147, %v323
    %326 = vrot.lane.b32.xlu0 %v126, 12
    %v327 = vpop.permute.xlu0 %326
    %329 = vst.msk [vmem:[#allocation2 + $0x1e] sm:$0x3f] %vm153, %v327
    %330 = vrot.lane.b32.xlu0 %v126, 16
    %v331 = vpop.permute.xlu0 %330
    %333 = vst.msk [vmem:[#allocation2 + $0x1d] sm:$0x7e] %vm158, %v331
    %334 = vrot.lane.b32.xlu0 %v126, 20
    %v335 = vpop.permute.xlu0 %334
    %337 = vst.msk [vmem:[#allocation2 + $0x1c] sm:$0xfc] %vm163, %v335
    %339 = vrot.lane.b32.xlu0 %v127, 24
    %v340 = vpop.permute.xlu0 %339
    %342 = vst.msk [vmem:[#allocation2 + $0x1e] sm:$0x3f] %vm169, %v340
    %343 = vrot.lane.b32.xlu0 %v127, 28
    %v344 = vpop.permute.xlu0 %343
    %346 = vst.msk [vmem:[#allocation2 + $0x1d] sm:$0x7e] %vm174, %v344
    %347 = vrot.lane.b32.xlu0 %v127, 32
    %v348 = vpop.permute.xlu0 %347
    %350 = vst.msk [vmem:[#allocation2 + $0x1c] sm:$0xfc] %vm179, %v348
    %351 = vst.msk [vmem:[#allocation2 + $0x24] sm:$0x3f] %vm136, %v128
    %353 = vrot.lane.b32.xlu0 %v128, 4
    %v354 = vpop.permute.xlu0 %353
    %356 = vst.msk [vmem:[#allocation2 + $0x23] sm:$0x7e] %vm142, %v354
    %357 = vrot.lane.b32.xlu0 %v128, 8
    %v358 = vpop.permute.xlu0 %357
    %360 = vst.msk [vmem:[#allocation2 + $0x22] sm:$0xfc] %vm147, %v358
    %362 = vrot.lane.b32.xlu0 %v129, 12
    %v363 = vpop.permute.xlu0 %362
    %365 = vst.msk [vmem:[#allocation2 + $0x24] sm:$0x3f] %vm153, %v363
    %366 = vrot.lane.b32.xlu0 %v129, 16
    %v367 = vpop.permute.xlu0 %366
    %369 = vst.msk [vmem:[#allocation2 + $0x23] sm:$0x7e] %vm158, %v367
    %370 = vrot.lane.b32.xlu0 %v129, 20
    %v371 = vpop.permute.xlu0 %370
    %373 = vst.msk [vmem:[#allocation2 + $0x22] sm:$0xfc] %vm163, %v371
    %375 = vrot.lane.b32.xlu0 %v130, 24
    %v376 = vpop.permute.xlu0 %375
    %378 = vst.msk [vmem:[#allocation2 + $0x24] sm:$0x3f] %vm169, %v376
    %379 = vrot.lane.b32.xlu0 %v130, 28
    %v380 = vpop.permute.xlu0 %379
    %382 = vst.msk [vmem:[#allocation2 + $0x23] sm:$0x7e] %vm174, %v380
    %383 = vrot.lane.b32.xlu0 %v130, 32
    %v384 = vpop.permute.xlu0 %383
    %386 = vst.msk [vmem:[#allocation2 + $0x22] sm:$0xfc] %vm179, %v384
    %387 = vst.msk [vmem:[#allocation2 + $0x2a] sm:$0x3f] %vm136, %v129
    %388 = vrot.lane.b32.xlu0 %v129, 4
    %v389 = vpop.permute.xlu0 %388
    %391 = vst.msk [vmem:[#allocation2 + $0x29] sm:$0x7e] %vm142, %v389
    %392 = vrot.lane.b32.xlu0 %v129, 8
    %v393 = vpop.permute.xlu0 %392
    %395 = vst.msk [vmem:[#allocation2 + $0x28] sm:$0xfc] %vm147, %v393
    %396 = vrot.lane.b32.xlu0 %v130, 12
    %v397 = vpop.permute.xlu0 %396
    %399 = vst.msk [vmem:[#allocation2 + $0x2a] sm:$0x3f] %vm153, %v397
    %400 = vrot.lane.b32.xlu0 %v130, 16
    %v401 = vpop.permute.xlu0 %400
    %403 = vst.msk [vmem:[#allocation2 + $0x29] sm:$0x7e] %vm158, %v401
    %404 = vrot.lane.b32.xlu0 %v130, 20
    %v405 = vpop.permute.xlu0 %404
    %407 = vst.msk [vmem:[#allocation2 + $0x28] sm:$0xfc] %vm163, %v405
    %409 = vrot.lane.b32.xlu0 %v131, 24
    %v410 = vpop.permute.xlu0 %409
    %412 = vst.msk [vmem:[#allocation2 + $0x2a] sm:$0x3f] %vm169, %v410
    %413 = vrot.lane.b32.xlu0 %v131, 28
    %v414 = vpop.permute.xlu0 %413
    %416 = vst.msk [vmem:[#allocation2 + $0x29] sm:$0x7e] %vm174, %v414
    %417 = vrot.lane.b32.xlu0 %v131, 32
    %v418 = vpop.permute.xlu0 %417
    %420 = vst.msk [vmem:[#allocation2 + $0x28] sm:$0xfc] %vm179, %v418
    %421 = vst.msk [vmem:[#allocation2 + $0x30] sm:$0x3f] %vm136, %v130
    %422 = vrot.lane.b32.xlu0 %v130, 4
    %v423 = vpop.permute.xlu0 %422
    %425 = vst.msk [vmem:[#allocation2 + $0x2f] sm:$0x7e] %vm142, %v423
    %426 = vrot.lane.b32.xlu0 %v130, 8
    %v427 = vpop.permute.xlu0 %426
    %429 = vst.msk [vmem:[#allocation2 + $0x2e] sm:$0xfc] %vm147, %v427
    %430 = vrot.lane.b32.xlu0 %v131, 12
    %v431 = vpop.permute.xlu0 %430
    %433 = vst.msk [vmem:[#allocation2 + $0x30] sm:$0x3f] %vm153, %v431
    %434 = vrot.lane.b32.xlu0 %v131, 16
    %v435 = vpop.permute.xlu0 %434
    %437 = vst.msk [vmem:[#allocation2 + $0x2f] sm:$0x7e] %vm158, %v435
    %438 = vrot.lane.b32.xlu0 %v131, 20
    %v439 = vpop.permute.xlu0 %438
    %441 = vst.msk [vmem:[#allocation2 + $0x2e] sm:$0xfc] %vm163, %v439
    %443 = vrot.lane.b32.xlu0 %v132, 24
    %v444 = vpop.permute.xlu0 %443
    %446 = vst.msk [vmem:[#allocation2 + $0x30] sm:$0x3f] %vm169, %v444
    %447 = vrot.lane.b32.xlu0 %v132, 28
    %v448 = vpop.permute.xlu0 %447
    %450 = vst.msk [vmem:[#allocation2 + $0x2f] sm:$0x7e] %vm174, %v448
    %451 = vrot.lane.b32.xlu0 %v132, 32
    %v452 = vpop.permute.xlu0 %451
    %454 = vst.msk [vmem:[#allocation2 + $0x2e] sm:$0xfc] %vm179, %v452
    %455 = vst.msk [vmem:[#allocation2 + $0x36] sm:$0x3f] %vm136, %v131
    %456 = vrot.lane.b32.xlu0 %v131, 4
    %v457 = vpop.permute.xlu0 %456
    %459 = vst.msk [vmem:[#allocation2 + $0x35] sm:$0x7e] %vm142, %v457
    %460 = vrot.lane.b32.xlu0 %v131, 8
    %v461 = vpop.permute.xlu0 %460
    %463 = vst.msk [vmem:[#allocation2 + $0x34] sm:$0xfc] %vm147, %v461
    %464 = vrot.lane.b32.xlu0 %v132, 12
    %v465 = vpop.permute.xlu0 %464
    %467 = vst.msk [vmem:[#allocation2 + $0x36] sm:$0x3f] %vm153, %v465
    %468 = vrot.lane.b32.xlu0 %v132, 16
    %v469 = vpop.permute.xlu0 %468
    %471 = vst.msk [vmem:[#allocation2 + $0x35] sm:$0x7e] %vm158, %v469
    %472 = vrot.lane.b32.xlu0 %v132, 20
    %v473 = vpop.permute.xlu0 %472
    %475 = vst.msk [vmem:[#allocation2 + $0x34] sm:$0xfc] %vm163, %v473
    %477 = vrot.lane.b32.xlu0 %v133, 24
    %v478 = vpop.permute.xlu0 %477
    %480 = vst.msk [vmem:[#allocation2 + $0x36] sm:$0x3f] %vm169, %v478
    %481 = vrot.lane.b32.xlu0 %v133, 28
    %v482 = vpop.permute.xlu0 %481
    %484 = vst.msk [vmem:[#allocation2 + $0x35] sm:$0x7e] %vm174, %v482
    %485 = vrot.lane.b32.xlu0 %v133, 32
    %v486 = vpop.permute.xlu0 %485
    %488 = vst.msk [vmem:[#allocation2 + $0x34] sm:$0xfc] %vm179, %v486
    %489 = vst.msk [vmem:[#allocation2 + $0x3c] sm:$0x3f] %vm136, %v132
    %490 = vrot.lane.b32.xlu0 %v132, 4
    %v491 = vpop.permute.xlu0 %490
    %493 = vst.msk [vmem:[#allocation2 + $0x3b] sm:$0x7e] %vm142, %v491
    %494 = vrot.lane.b32.xlu0 %v132, 8
    %v495 = vpop.permute.xlu0 %494
    %497 = vst.msk [vmem:[#allocation2 + $0x3a] sm:$0xfc] %vm147, %v495
    %498 = vrot.lane.b32.xlu0 %v133, 12
    %v499 = vpop.permute.xlu0 %498
    %501 = vst.msk [vmem:[#allocation2 + $0x3c] sm:$0x3f] %vm153, %v499
    %502 = vrot.lane.b32.xlu0 %v133, 16
    %v503 = vpop.permute.xlu0 %502
    %505 = vst.msk [vmem:[#allocation2 + $0x3b] sm:$0x7e] %vm158, %v503
    %506 = vrot.lane.b32.xlu0 %v133, 20
    %v507 = vpop.permute.xlu0 %506
    %509 = vst.msk [vmem:[#allocation2 + $0x3a] sm:$0xfc] %vm163, %v507
    %511 = vrot.lane.b32.xlu0 %v134, 24
    %v512 = vpop.permute.xlu0 %511
    %514 = vst.msk [vmem:[#allocation2 + $0x3c] sm:$0x3f] %vm169, %v512
    %515 = vrot.lane.b32.xlu0 %v134, 28
    %v516 = vpop.permute.xlu0 %515
    %518 = vst.msk [vmem:[#allocation2 + $0x3b] sm:$0x7e] %vm174, %v516
    %519 = vrot.lane.b32.xlu0 %v134, 32
    %v520 = vpop.permute.xlu0 %519
    %522 = vst.msk [vmem:[#allocation2 + $0x3a] sm:$0xfc] %vm179, %v520
    %523 = vst.msk [vmem:[#allocation2 + $0x42] sm:$0x3f] %vm136, %v133
    %524 = vrot.lane.b32.xlu0 %v133, 4
    %v525 = vpop.permute.xlu0 %524
    %527 = vst.msk [vmem:[#allocation2 + $0x41] sm:$0x7e] %vm142, %v525
    %528 = vrot.lane.b32.xlu0 %v133, 8
    %v529 = vpop.permute.xlu0 %528
    %531 = vst.msk [vmem:[#allocation2 + $0x40] sm:$0xfc] %vm147, %v529
    %532 = vrot.lane.b32.xlu0 %v134, 12
    %v533 = vpop.permute.xlu0 %532
    %535 = vst.msk [vmem:[#allocation2 + $0x42] sm:$0x3f] %vm153, %v533
    %536 = vrot.lane.b32.xlu0 %v134, 16
    %v537 = vpop.permute.xlu0 %536
    %539 = vst.msk [vmem:[#allocation2 + $0x41] sm:$0x7e] %vm158, %v537
    %540 = vrot.lane.b32.xlu0 %v134, 20
    %v541 = vpop.permute.xlu0 %540
    %543 = vst.msk [vmem:[#allocation2 + $0x40] sm:$0xfc] %vm163, %v541
    %545 = vrot.lane.b32.xlu0 %v135, 24
    %v546 = vpop.permute.xlu0 %545
    %548 = vst.msk [vmem:[#allocation2 + $0x42] sm:$0x3f] %vm169, %v546
    %549 = vrot.lane.b32.xlu0 %v135, 28
    %v550 = vpop.permute.xlu0 %549
    %552 = vst.msk [vmem:[#allocation2 + $0x41] sm:$0x7e] %vm174, %v550
    %553 = vrot.lane.b32.xlu0 %v135, 32
    %v554 = vpop.permute.xlu0 %553
    %556 = vst.msk [vmem:[#allocation2 + $0x40] sm:$0xfc] %vm179, %v554
    %v557 = vld [vmem:[#allocation2] sm:$0xff]
    %v558 = vld [vmem:[#allocation2 + $0x8] sm:$0xff]
    %v559 = vld [vmem:[#allocation2 + $0x10] sm:$0xff]
    %v560 = vld [vmem:[#allocation2 + $0x18] sm:$0xff]
    %v561 = vld [vmem:[#allocation2 + $0x20] sm:$0xff]
    %v562 = vld [vmem:[#allocation2 + $0x28] sm:$0xff]
    %v563 = vld [vmem:[#allocation2 + $0x30] sm:$0xff]
    %v564 = vld [vmem:[#allocation2 + $0x38] sm:$0xff]
    %v565 = vld [vmem:[#allocation2 + $0x40] sm:$0xff]
    %v566 = vld [vmem:[%s1] sm:$0xff]
    %v567 = vld [vmem:[%s1 + $0x8] sm:$0xff]
    %v568 = vld [vmem:[%s1 + $0x10] sm:$0xff]
    %v569 = vld [vmem:[%s1 + $0x18] sm:$0xff]
    %v570 = vld [vmem:[%s1 + $0x20] sm:$0xf]
    %vm571 = vcmask 293888
    %v573 = vsel %vm571, %v557, 0
    %v576 = vsel %vm571, %v558, 0
    %v579 = vsel %vm571, %v559, 0
    %v582 = vsel %vm571, %v560, 0
    %v585 = vsel %vm571, %v561, 0
    %v588 = vsel %vm571, %v562, 0
    %v591 = vsel %vm571, %v563, 0
    %v594 = vsel %vm571, %v564, 0
    %v597 = vsel %vm571, %v565, 0
    %vm599 = vcmask 1043456
    %v601 = vsel %vm599, %v570, 0
    %603 = vmatpush.msra.mxu0 0.0
    %604 = vmatpush.msra.mxu0 0.0
    %605 = vmatpush.msra.mxu0 0.0
    %606 = vmatpush.msra.mxu0 0.0
    %607 = vmatpush.msra.mxu0 0.0
    %608 = vmatpush.msra.mxu0 0.0
    %609 = vmatpush.msra.mxu0 0.0
    %610 = vmatpush.msra.mxu0 0.0
    %611 = vmatpush.msra.mxu0 0.0
    %612 = vmatpush.msra.mxu0 0.0
    %613 = vmatpush.msra.mxu0 0.0
    %614 = vmatpush.msra.mxu0 %v601
    %615 = vmatpush.msra.mxu0 %v569
    %616 = vmatpush.msra.mxu0 %v568
    %617 = vmatpush.msra.mxu0 %v567
    %618 = vmatpush.msra.mxu0 %v566
    %619 = vmatmul.f32.gmra.mxu0 %v573
    %v620 = vpop.f32.mrf.mxu0
    %v621 = vadd.f32 0.0, %v620
    %622 = vmatmul.f32.gmra.mxu0 %v576
    %v623 = vpop.f32.mrf.mxu0
    %v624 = vadd.f32 0.0, %v623
    %625 = vmatmul.f32.gmra.mxu0 %v579
    %v626 = vpop.f32.mrf.mxu0
    %v627 = vadd.f32 0.0, %v626
    %628 = vmatmul.f32.gmra.mxu0 %v582
    %v629 = vpop.f32.mrf.mxu0
    %v630 = vadd.f32 0.0, %v629
    %631 = vmatmul.f32.gmra.mxu0 %v585
    %v632 = vpop.f32.mrf.mxu0
    %v633 = vadd.f32 0.0, %v632
    %634 = vmatmul.f32.gmra.mxu0 %v588
    %v635 = vpop.f32.mrf.mxu0
    %v636 = vadd.f32 0.0, %v635
    %637 = vmatmul.f32.gmra.mxu0 %v591
    %v638 = vpop.f32.mrf.mxu0
    %v639 = vadd.f32 0.0, %v638
    %640 = vmatmul.f32.gmra.mxu0 %v594
    %v641 = vpop.f32.mrf.mxu0
    %v642 = vadd.f32 0.0, %v641
    %643 = vmatmul.f32.gmra.mxu0 %v597
    %v644 = vpop.f32.mrf.mxu0
    %v645 = vadd.f32 0.0, %v644
    %646 = vdwg.mxu0
    %v647 = vld [vmem:[%s3] sm:$0x3]
    %vm648 = vcmask 64512
    %v649 = vsel %vm648, %v621, 0.0
    %v650 = vsel %vm648, %v624, 0.0
    %v651 = vadd.f32 %v649, %v650
    %v652 = vsel %vm648, %v627, 0.0
    %v653 = vadd.f32 %v651, %v652
    %v654 = vsel %vm648, %v630, 0.0
    %v655 = vadd.f32 %v653, %v654
    %v656 = vsel %vm648, %v633, 0.0
    %v657 = vadd.f32 %v655, %v656
    %v658 = vsel %vm648, %v636, 0.0
    %v659 = vadd.f32 %v657, %v658
    %v660 = vsel %vm648, %v639, 0.0
    %v661 = vadd.f32 %v659, %v660
    %v662 = vsel %vm648, %v642, 0.0
    %v663 = vadd.f32 %v661, %v662
    %v664 = vsel %vm648, %v645, 0.0
    %v665 = vadd.f32 %v663, %v664
    %v666 = vrot.slane %v665, 4
    %v667 = vadd.f32 %v665, %v666
    %v668 = vrot.slane %v667, 2
    %v669 = vadd.f32 %v667, %v668
    %v670 = vrot.slane %v669, 1
    %v671 = vadd.f32 %v669, %v670
    %v672 = vrcp.pop 72.0
    %v673 = vmul.f32 72.0, %v672
    %v674 = vsub.f32 1.0, %v673
    %v675 = vmul.f32 %v672, %v674
    %v676 = vadd.f32 %v672, %v675
    %vm677 = vweird.f32 %v672
    %v678 = vsel %vm677, %v672, %v676
    %v679 = vmul.f32 %v671, %v678
    %v680 = vsub.f32 %v621, %v679
    %v681 = vsub.f32 %v624, %v679
    %v682 = vsub.f32 %v627, %v679
    %v683 = vsub.f32 %v630, %v679
    %v684 = vsub.f32 %v633, %v679
    %v685 = vsub.f32 %v636, %v679
    %v686 = vsub.f32 %v639, %v679
    %v687 = vsub.f32 %v642, %v679
    %v688 = vsub.f32 %v645, %v679
    %v689 = vmul.f32 %v680, %v680
    %v690 = vmul.f32 %v681, %v681
    %v691 = vmul.f32 %v682, %v682
    %v692 = vmul.f32 %v683, %v683
    %v693 = vmul.f32 %v684, %v684
    %v694 = vmul.f32 %v685, %v685
    %v695 = vmul.f32 %v686, %v686
    %v696 = vmul.f32 %v687, %v687
    %v697 = vmul.f32 %v688, %v688
    %v698 = vsel %vm648, %v689, 0.0
    %v699 = vsel %vm648, %v690, 0.0
    %v700 = vadd.f32 %v698, %v699
    %v701 = vsel %vm648, %v691, 0.0
    %v702 = vadd.f32 %v700, %v701
    %v703 = vsel %vm648, %v692, 0.0
    %v704 = vadd.f32 %v702, %v703
    %v705 = vsel %vm648, %v693, 0.0
    %v706 = vadd.f32 %v704, %v705
    %v707 = vsel %vm648, %v694, 0.0
    %v708 = vadd.f32 %v706, %v707
    %v709 = vsel %vm648, %v695, 0.0
    %v710 = vadd.f32 %v708, %v709
    %v711 = vsel %vm648, %v696, 0.0
    %v712 = vadd.f32 %v710, %v711
    %v713 = vsel %vm648, %v697, 0.0
    %v714 = vadd.f32 %v712, %v713
    %v715 = vrot.slane %v714, 4
    %v716 = vadd.f32 %v714, %v715
    %v717 = vrot.slane %v716, 2
    %v718 = vadd.f32 %v716, %v717
    %v719 = vrot.slane %v718, 1
    %v720 = vadd.f32 %v718, %v719
    %v721 = vmul.f32 %v720, %v678
    %v722 = vadd.f32 %v721, 1e-05
    %v723 = vrsqrt.pop %v722
    %v724 = vmul.f32 %v723, %v722
    %v725 = vmul.f32 %v724, %v723
    %v726 = vmul.f32 0.5, %v725
    %v727 = vsub.f32 1.5, %v726
    %v728 = vmul.f32 %v723, %v727
    %vm729 = vweird.f32 %v722
    %vm730 = vweird.f32 %v723
    %vm731 = vmor %vm729, %vm730
    %v732 = vsel %vm731, %v723, %v728
    %v733 = vmul.f32 %v647, %v732
    %v734 = vperm.slane %v733, 0
    %v735 = vmul.f32 %v621, %v734
    %v736 = vmul.f32 %v624, %v734
    %v737 = vmul.f32 %v627, %v734
    %v738 = vmul.f32 %v630, %v734
    %v739 = vmul.f32 %v633, %v734
    %v740 = vmul.f32 %v636, %v734
    %v741 = vmul.f32 %v639, %v734
    %v742 = vmul.f32 %v642, %v734
    %v743 = vmul.f32 %v645, %v734
    %v744 = vmul.f32 %v679, %v733
    %v746 = vrot.slane %v744, 7
    %v748 = vsub.f32 %v647, %v746
    %v749 = vperm.slane %v748, 1
    %v750 = vadd.f32 %v735, %v749
    %v751 = vadd.f32 %v736, %v749
    %v752 = vadd.f32 %v737, %v749
    %v753 = vadd.f32 %v738, %v749
    %v754 = vadd.f32 %v739, %v749
    %v755 = vadd.f32 %v740, %v749
    %v756 = vadd.f32 %v741, %v749
    %v757 = vadd.f32 %v742, %v749
    %v758 = vadd.f32 %v743, %v749
    %v759 = vmax.f32 %v750, 0.0
    %v760 = vmax.f32 %v751, 0.0
    %v761 = vmax.f32 %v752, 0.0
    %v762 = vmax.f32 %v753, 0.0
    %v763 = vmax.f32 %v754, 0.0
    %v764 = vmax.f32 %v755, 0.0
    %v765 = vmax.f32 %v756, 0.0
    %v766 = vmax.f32 %v757, 0.0
    %v767 = vmax.f32 %v758, 0.0
    %vm768 = vcmask 60416
    %769 = vst.msk [vmem:[#allocation3] sm:$0xf] %vm768, %v759
    %771 = vrot.lane.b32.xlu0 %v759, 8
    %v772 = vpop.permute.xlu0 %771
    %vm774 = vcmask 127041
    %775 = vst.msk [vmem:[#allocation3 - $0x1] sm:$0x1e] %vm774, %v772
    %776 = vrot.lane.b32.xlu0 %v759, 16
    %v777 = vpop.permute.xlu0 %776
    %vm779 = vcmask 193666
    %780 = vst.msk [vmem:[#allocation3 - $0x2] sm:$0x3c] %vm779, %v777
    %782 = vrot.lane.b32.xlu0 %v759, 24
    %v783 = vpop.permute.xlu0 %782
    %784 = vrot.lane.b32.xlu0 %v760, 24
    %v785 = vpop.permute.xlu0 %784
    %vm788 = vcmask 261318
    %789 = vst.msk [vmem:[#allocation3 - $0x6] sm:$0xc0] %vm788, %v783
    %vm790 = vcmask 255168
    %791 = vst.msk [vmem:[#allocation3 + $0x2] sm:$0x3] %vm790, %v785
    %792 = vrot.lane.b32.xlu0 %v759, 32
    %v793 = vpop.permute.xlu0 %792
    %794 = vrot.lane.b32.xlu0 %v760, 32
    %v795 = vpop.permute.xlu0 %794
    %vm798 = vcmask 326919
    %799 = vst.msk [vmem:[#allocation3 - $0x7] sm:$0x80] %vm798, %v793
    %vm800 = vcmask 321792
    %801 = vst.msk [vmem:[#allocation3 + $0x1] sm:$0x7] %vm800, %v795
    %802 = vrot.lane.b32.xlu0 %v760, 40
    %v803 = vpop.permute.xlu0 %802
    %vm805 = vcmask 388416
    %806 = vst.msk [vmem:[#allocation3] sm:$0xf] %vm805, %v803
    %807 = vrot.lane.b32.xlu0 %v760, 48
    %v808 = vpop.permute.xlu0 %807
    %vm810 = vcmask 458116
    %811 = vst.msk [vmem:[#allocation3 - $0x4] sm:$0xf0] %vm810, %v808
    %813 = vrot.lane.b32.xlu0 %v760, 56
    %v814 = vpop.permute.xlu0 %813
    %815 = vrot.lane.b32.xlu0 %v761, 56
    %v816 = vpop.permute.xlu0 %815
    %vm819 = vcmask 523717
    %820 = vst.msk [vmem:[#allocation3 - $0x5] sm:$0xe0] %vm819, %v814
    %vm821 = vcmask 516544
    %822 = vst.msk [vmem:[#allocation3 + $0x3] sm:$0x1] %vm821, %v816
    %823 = vrot.lane.b32.xlu0 %v760, 64
    %v824 = vpop.permute.xlu0 %823
    %825 = vrot.lane.b32.xlu0 %v761, 64
    %v826 = vpop.permute.xlu0 %825
    %vm829 = vcmask 589318
    %830 = vst.msk [vmem:[#allocation3 - $0x6] sm:$0xc0] %vm829, %v824
    %vm831 = vcmask 583168
    %832 = vst.msk [vmem:[#allocation3 + $0x2] sm:$0x3] %vm831, %v826
    %vm833 = vcmask 64518
    %834 = vst.msk [vmem:[#allocation3 - $0x2] sm:$0xc0] %vm833, %v759
    %vm835 = vcmask 58368
    %836 = vst.msk [vmem:[#allocation3 + $0x6] sm:$0x3] %vm835, %v760
    %837 = vrot.lane.b32.xlu0 %v760, 8
    %v838 = vpop.permute.xlu0 %837
    %vm840 = vcmask 130119
    %841 = vst.msk [vmem:[#allocation3 - $0x3] sm:$0x80] %vm840, %v772
    %vm842 = vcmask 124992
    %843 = vst.msk [vmem:[#allocation3 + $0x5] sm:$0x7] %vm842, %v838
    %844 = vrot.lane.b32.xlu0 %v760, 16
    %v845 = vpop.permute.xlu0 %844
    %vm847 = vcmask 191616
    %848 = vst.msk [vmem:[#allocation3 + $0x4] sm:$0xf] %vm847, %v845
    %vm849 = vcmask 261316
    %850 = vst.msk [vmem:[#allocation3] sm:$0xf0] %vm849, %v785
    %851 = vrot.lane.b32.xlu0 %v761, 32
    %v852 = vpop.permute.xlu0 %851
    %vm854 = vcmask 326917
    %855 = vst.msk [vmem:[#allocation3 - $0x1] sm:$0xe0] %vm854, %v795
    %vm856 = vcmask 319744
    %857 = vst.msk [vmem:[#allocation3 + $0x7] sm:$0x1] %vm856, %v852
    %858 = vrot.lane.b32.xlu0 %v761, 40
    %v859 = vpop.permute.xlu0 %858
    %vm861 = vcmask 392518
    %862 = vst.msk [vmem:[#allocation3 - $0x2] sm:$0xc0] %vm861, %v803
    %vm863 = vcmask 386368
    %864 = vst.msk [vmem:[#allocation3 + $0x6] sm:$0x3] %vm863, %v859
    %865 = vrot.lane.b32.xlu0 %v761, 48
    %v866 = vpop.permute.xlu0 %865
    %vm868 = vcmask 456066
    %869 = vst.msk [vmem:[#allocation3 + $0x2] sm:$0x3c] %vm868, %v866
    %vm870 = vcmask 522691
    %871 = vst.msk [vmem:[#allocation3 + $0x1] sm:$0x78] %vm870, %v816
    %vm872 = vcmask 589316
    %873 = vst.msk [vmem:[#allocation3] sm:$0xf0] %vm872, %v826
    %vm874 = vcmask 64516
    %875 = vst.msk [vmem:[#allocation3 + $0x4] sm:$0xf0] %vm874, %v760
    %876 = vrot.lane.b32.xlu0 %v761, 8
    %v877 = vpop.permute.xlu0 %876
    %vm879 = vcmask 130117
    %880 = vst.msk [vmem:[#allocation3 + $0x3] sm:$0xe0] %vm879, %v838
    %vm881 = vcmask 122944
    %882 = vst.msk [vmem:[#allocation3 + $0xb] sm:$0x1] %vm881, %v877
    %883 = vrot.lane.b32.xlu0 %v761, 16
    %v884 = vpop.permute.xlu0 %883
    %vm886 = vcmask 195718
    %887 = vst.msk [vmem:[#allocation3 + $0x2] sm:$0xc0] %vm886, %v845
    %vm888 = vcmask 189568
    %889 = vst.msk [vmem:[#allocation3 + $0xa] sm:$0x3] %vm888, %v884
    %890 = vrot.lane.b32.xlu0 %v761, 24
    %v891 = vpop.permute.xlu0 %890
    %vm893 = vcmask 259266
    %894 = vst.msk [vmem:[#allocation3 + $0x6] sm:$0x3c] %vm893, %v891
    %vm895 = vcmask 325891
    %896 = vst.msk [vmem:[#allocation3 + $0x5] sm:$0x78] %vm895, %v852
    %vm897 = vcmask 392516
    %898 = vst.msk [vmem:[#allocation3 + $0x4] sm:$0xf0] %vm897, %v859
    %900 = vrot.lane.b32.xlu0 %v762, 48
    %v901 = vpop.permute.xlu0 %900
    %vm903 = vcmask 454016
    %904 = vst.msk [vmem:[#allocation3 + $0x8] sm:$0xf] %vm903, %v901
    %905 = vrot.lane.b32.xlu0 %v762, 56
    %v906 = vpop.permute.xlu0 %905
    %vm908 = vcmask 520641
    %909 = vst.msk [vmem:[#allocation3 + $0x7] sm:$0x1e] %vm908, %v906
    %910 = vrot.lane.b32.xlu0 %v762, 64
    %v911 = vpop.permute.xlu0 %910
    %vm913 = vcmask 587266
    %914 = vst.msk [vmem:[#allocation3 + $0x6] sm:$0x3c] %vm913, %v911
    %vm915 = vcmask 62466
    %916 = vst.msk [vmem:[#allocation3 + $0xa] sm:$0x3c] %vm915, %v761
    %vm917 = vcmask 129091
    %918 = vst.msk [vmem:[#allocation3 + $0x9] sm:$0x78] %vm917, %v877
    %vm919 = vcmask 195716
    %920 = vst.msk [vmem:[#allocation3 + $0x8] sm:$0xf0] %vm919, %v884
    %921 = vrot.lane.b32.xlu0 %v762, 24
    %v922 = vpop.permute.xlu0 %921
    %vm924 = vcmask 257216
    %925 = vst.msk [vmem:[#allocation3 + $0xc] sm:$0xf] %vm924, %v922
    %926 = vrot.lane.b32.xlu0 %v762, 32
    %v927 = vpop.permute.xlu0 %926
    %vm929 = vcmask 323841
    %930 = vst.msk [vmem:[#allocation3 + $0xb] sm:$0x1e] %vm929, %v927
    %931 = vrot.lane.b32.xlu0 %v762, 40
    %v932 = vpop.permute.xlu0 %931
    %vm934 = vcmask 390466
    %935 = vst.msk [vmem:[#allocation3 + $0xa] sm:$0x3c] %vm934, %v932
    %937 = vrot.lane.b32.xlu0 %v763, 48
    %v938 = vpop.permute.xlu0 %937
    %vm940 = vcmask 458118
    %941 = vst.msk [vmem:[#allocation3 + $0x6] sm:$0xc0] %vm940, %v901
    %vm942 = vcmask 451968
    %943 = vst.msk [vmem:[#allocation3 + $0xe] sm:$0x3] %vm942, %v938
    %944 = vrot.lane.b32.xlu0 %v763, 56
    %v945 = vpop.permute.xlu0 %944
    %vm947 = vcmask 523719
    %948 = vst.msk [vmem:[#allocation3 + $0x5] sm:$0x80] %vm947, %v906
    %vm949 = vcmask 518592
    %950 = vst.msk [vmem:[#allocation3 + $0xd] sm:$0x7] %vm949, %v945
    %951 = vrot.lane.b32.xlu0 %v763, 64
    %v952 = vpop.permute.xlu0 %951
    %vm954 = vcmask 585216
    %955 = vst.msk [vmem:[#allocation3 + $0xc] sm:$0xf] %vm954, %v952
    %956 = vst.msk [vmem:[#allocation3 + $0xc] sm:$0xf0] %vm874, %v763
    %958 = vrot.lane.b32.xlu0 %v763, 8
    %v959 = vpop.permute.xlu0 %958
    %960 = vrot.lane.b32.xlu0 %v764, 8
    %v961 = vpop.permute.xlu0 %960
    %964 = vst.msk [vmem:[#allocation3 + $0xb] sm:$0xe0] %vm879, %v959
    %965 = vst.msk [vmem:[#allocation3 + $0x13] sm:$0x1] %vm881, %v961
    %966 = vrot.lane.b32.xlu0 %v763, 16
    %v967 = vpop.permute.xlu0 %966
    %968 = vrot.lane.b32.xlu0 %v764, 16
    %v969 = vpop.permute.xlu0 %968
    %972 = vst.msk [vmem:[#allocation3 + $0xa] sm:$0xc0] %vm886, %v967
    %973 = vst.msk [vmem:[#allocation3 + $0x12] sm:$0x3] %vm888, %v969
    %974 = vrot.lane.b32.xlu0 %v764, 24
    %v975 = vpop.permute.xlu0 %974
    %977 = vst.msk [vmem:[#allocation3 + $0xe] sm:$0x3c] %vm893, %v975
    %978 = vrot.lane.b32.xlu0 %v764, 32
    %v979 = vpop.permute.xlu0 %978
    %981 = vst.msk [vmem:[#allocation3 + $0xd] sm:$0x78] %vm895, %v979
    %982 = vrot.lane.b32.xlu0 %v764, 40
    %v983 = vpop.permute.xlu0 %982
    %985 = vst.msk [vmem:[#allocation3 + $0xc] sm:$0xf0] %vm897, %v983
    %987 = vrot.lane.b32.xlu0 %v765, 48
    %v988 = vpop.permute.xlu0 %987
    %990 = vst.msk [vmem:[#allocation3 + $0x10] sm:$0xf] %vm903, %v988
    %991 = vrot.lane.b32.xlu0 %v765, 56
    %v992 = vpop.permute.xlu0 %991
    %994 = vst.msk [vmem:[#allocation3 + $0xf] sm:$0x1e] %vm908, %v992
    %995 = vrot.lane.b32.xlu0 %v765, 64
    %v996 = vpop.permute.xlu0 %995
    %998 = vst.msk [vmem:[#allocation3 + $0xe] sm:$0x3c] %vm913, %v996
    %999 = vst.msk [vmem:[#allocation3 + $0x12] sm:$0x3c] %vm915, %v764
    %1000 = vst.msk [vmem:[#allocation3 + $0x11] sm:$0x78] %vm917, %v961
    %1001 = vst.msk [vmem:[#allocation3 + $0x10] sm:$0xf0] %vm919, %v969
    %1002 = vrot.lane.b32.xlu0 %v765, 24
    %v1003 = vpop.permute.xlu0 %1002
    %1005 = vst.msk [vmem:[#allocation3 + $0x14] sm:$0xf] %vm924, %v1003
    %1006 = vrot.lane.b32.xlu0 %v765, 32
    %v1007 = vpop.permute.xlu0 %1006
    %1009 = vst.msk [vmem:[#allocation3 + $0x13] sm:$0x1e] %vm929, %v1007
    %1010 = vrot.lane.b32.xlu0 %v765, 40
    %v1011 = vpop.permute.xlu0 %1010
    %1013 = vst.msk [vmem:[#allocation3 + $0x12] sm:$0x3c] %vm934, %v1011
    %1015 = vrot.lane.b32.xlu0 %v766, 48
    %v1016 = vpop.permute.xlu0 %1015
    %1018 = vst.msk [vmem:[#allocation3 + $0xe] sm:$0xc0] %vm940, %v988
    %1019 = vst.msk [vmem:[#allocation3 + $0x16] sm:$0x3] %vm942, %v1016
    %1020 = vrot.lane.b32.xlu0 %v766, 56
    %v1021 = vpop.permute.xlu0 %1020
    %1023 = vst.msk [vmem:[#allocation3 + $0xd] sm:$0x80] %vm947, %v992
    %1024 = vst.msk [vmem:[#allocation3 + $0x15] sm:$0x7] %vm949, %v1021
    %1025 = vrot.lane.b32.xlu0 %v766, 64
    %v1026 = vpop.permute.xlu0 %1025
    %1028 = vst.msk [vmem:[#allocation3 + $0x14] sm:$0xf] %vm954, %v1026
    %1029 = vst.msk [vmem:[#allocation3 + $0x18] sm:$0xf] %vm768, %v765
    %1030 = vrot.lane.b32.xlu0 %v765, 8
    %v1031 = vpop.permute.xlu0 %1030
    %1033 = vst.msk [vmem:[#allocation3 + $0x17] sm:$0x1e] %vm774, %v1031
    %1034 = vrot.lane.b32.xlu0 %v765, 16
    %v1035 = vpop.permute.xlu0 %1034
    %1037 = vst.msk [vmem:[#allocation3 + $0x16] sm:$0x3c] %vm779, %v1035
    %1038 = vrot.lane.b32.xlu0 %v766, 24
    %v1039 = vpop.permute.xlu0 %1038
    %1041 = vst.msk [vmem:[#allocation3 + $0x12] sm:$0xc0] %vm788, %v1003
    %1042 = vst.msk [vmem:[#allocation3 + $0x1a] sm:$0x3] %vm790, %v1039
    %1043 = vrot.lane.b32.xlu0 %v766, 32
    %v1044 = vpop.permute.xlu0 %1043
    %1046 = vst.msk [vmem:[#allocation3 + $0x11] sm:$0x80] %vm798, %v1007
    %1047 = vst.msk [vmem:[#allocation3 + $0x19] sm:$0x7] %vm800, %v1044
    %1048 = vrot.lane.b32.xlu0 %v766, 40
    %v1049 = vpop.permute.xlu0 %1048
    %1051 = vst.msk [vmem:[#allocation3 + $0x18] sm:$0xf] %vm805, %v1049
    %1052 = vst.msk [vmem:[#allocation3 + $0x14] sm:$0xf0] %vm810, %v1016
    %1054 = vrot.lane.b32.xlu0 %v767, 56
    %v1055 = vpop.permute.xlu0 %1054
    %1057 = vst.msk [vmem:[#allocation3 + $0x13] sm:$0xe0] %vm819, %v1021
    %1058 = vst.msk [vmem:[#allocation3 + $0x1b] sm:$0x1] %vm821, %v1055
    %1059 = vrot.lane.b32.xlu0 %v767, 64
    %v1060 = vpop.permute.xlu0 %1059
    %1062 = vst.msk [vmem:[#allocation3 + $0x12] sm:$0xc0] %vm829, %v1026
    %1063 = vst.msk [vmem:[#allocation3 + $0x1a] sm:$0x3] %vm831, %v1060
    %1064 = vst.msk [vmem:[#allocation3 + $0x16] sm:$0xc0] %vm833, %v765
    %1065 = vst.msk [vmem:[#allocation3 + $0x1e] sm:$0x3] %vm835, %v766
    %1066 = vrot.lane.b32.xlu0 %v766, 8
    %v1067 = vpop.permute.xlu0 %1066
    %1069 = vst.msk [vmem:[#allocation3 + $0x15] sm:$0x80] %vm840, %v1031
    %1070 = vst.msk [vmem:[#allocation3 + $0x1d] sm:$0x7] %vm842, %v1067
    %1071 = vrot.lane.b32.xlu0 %v766, 16
    %v1072 = vpop.permute.xlu0 %1071
    %1074 = vst.msk [vmem:[#allocation3 + $0x1c] sm:$0xf] %vm847, %v1072
    %1075 = vst.msk [vmem:[#allocation3 + $0x18] sm:$0xf0] %vm849, %v1039
    %1076 = vrot.lane.b32.xlu0 %v767, 32
    %v1077 = vpop.permute.xlu0 %1076
    %1079 = vst.msk [vmem:[#allocation3 + $0x17] sm:$0xe0] %vm854, %v1044
    %1080 = vst.msk [vmem:[#allocation3 + $0x1f] sm:$0x1] %vm856, %v1077
    %1081 = vrot.lane.b32.xlu0 %v767, 40
    %v1082 = vpop.permute.xlu0 %1081
    %1084 = vst.msk [vmem:[#allocation3 + $0x16] sm:$0xc0] %vm861, %v1049
    %1085 = vst.msk [vmem:[#allocation3 + $0x1e] sm:$0x3] %vm863, %v1082
    %1086 = vrot.lane.b32.xlu0 %v767, 48
    %v1087 = vpop.permute.xlu0 %1086
    %1089 = vst.msk [vmem:[#allocation3 + $0x1a] sm:$0x3c] %vm868, %v1087
    %1090 = vst.msk [vmem:[#allocation3 + $0x19] sm:$0x78] %vm870, %v1055
    %1091 = vst.msk [vmem:[#allocation3 + $0x18] sm:$0xf0] %vm872, %v1060
    %v1092 = vld [vmem:[#allocation3] sm:$0xff]
    %v1093 = vld [vmem:[#allocation3 + $0x8] sm:$0xff]
    %v1094 = vld [vmem:[#allocation3 + $0x10] sm:$0xff]
    %v1095 = vld [vmem:[#allocation3 + $0x18] sm:$0xff]
    %v1096 = vld [vmem:[%s2] sm:$0xff]
    %v1097 = vld [vmem:[%s2 + $0x8] sm:$0xff]
    %v1098 = vld [vmem:[%s2 + $0x10] sm:$0xff]
    %v1099 = vld [vmem:[%s2 + $0x18] sm:$0xff]
    %v1100 = vld [vmem:[%s2 + $0x20] sm:$0xff]
    %v1101 = vld [vmem:[%s2 + $0x28] sm:$0xff]
    %v1102 = vld [vmem:[%s2 + $0x30] sm:$0xff]
    %v1103 = vld [vmem:[%s2 + $0x38] sm:$0xff]
    %v1104 = vld [vmem:[%s2 + $0x40] sm:$0xff]
    %vm1105 = vcmask 588800
    %v1107 = vsel %vm1105, %v1092, 0
    %v1110 = vsel %vm1105, %v1093, 0
    %v1113 = vsel %vm1105, %v1094, 0
    %v1116 = vsel %vm1105, %v1095, 0
    %1118 = vmatpush.msra.mxu0 0.0
    %1119 = vmatpush.msra.mxu0 0.0
    %1120 = vmatpush.msra.mxu0 0.0
    %1121 = vmatpush.msra.mxu0 0.0
    %1122 = vmatpush.msra.mxu0 0.0
    %1123 = vmatpush.msra.mxu0 0.0
    %1124 = vmatpush.msra.mxu0 0.0
    %1125 = vmatpush.msra.mxu0 %v1104
    %1126 = vmatpush.msra.mxu0 %v1103
    %1127 = vmatpush.msra.mxu0 %v1102
    %1128 = vmatpush.msra.mxu0 %v1101
    %1129 = vmatpush.msra.mxu0 %v1100
    %1130 = vmatpush.msra.mxu0 %v1099
    %1131 = vmatpush.msra.mxu0 %v1098
    %1132 = vmatpush.msra.mxu0 %v1097
    %1133 = vmatpush.msra.mxu0 %v1096
    %1134 = vmatmul.f32.gmra.mxu0 %v1107
    %v1135 = vpop.f32.mrf.mxu0
    %v1136 = vadd.f32 0.0, %v1135
    %1137 = vmatmul.f32.gmra.mxu0 %v1110
    %v1138 = vpop.f32.mrf.mxu0
    %v1139 = vadd.f32 0.0, %v1138
    %1140 = vmatmul.f32.gmra.mxu0 %v1113
    %v1141 = vpop.f32.mrf.mxu0
    %v1142 = vadd.f32 0.0, %v1141
    %1143 = vmatmul.f32.gmra.mxu0 %v1116
    %v1144 = vpop.f32.mrf.mxu0
    %v1145 = vadd.f32 0.0, %v1144
    %1146 = vdwg.mxu0
    %v1147 = vld [vmem:[%s4] sm:$0x3]
    %v1148 = vsel %vm648, %v1136, 0.0
    %v1149 = vsel %vm648, %v1139, 0.0
    %v1150 = vadd.f32 %v1148, %v1149
    %v1151 = vsel %vm648, %v1142, 0.0
    %v1152 = vadd.f32 %v1150, %v1151
    %v1153 = vsel %vm648, %v1145, 0.0
    %v1154 = vadd.f32 %v1152, %v1153
    %v1155 = vrot.slane %v1154, 4
    %v1156 = vadd.f32 %v1154, %v1155
    %v1157 = vrot.slane %v1156, 2
    %v1158 = vadd.f32 %v1156, %v1157
    %v1159 = vrot.slane %v1158, 1
    %v1160 = vadd.f32 %v1158, %v1159
    %v1161 = vrcp.pop 32.0
    %v1162 = vmul.f32 32.0, %v1161
    %v1163 = vsub.f32 1.0, %v1162
    %v1164 = vmul.f32 %v1161, %v1163
    %v1165 = vadd.f32 %v1161, %v1164
    %vm1166 = vweird.f32 %v1161
    %v1167 = vsel %vm1166, %v1161, %v1165
    %v1168 = vmul.f32 %v1160, %v1167
    %v1169 = vsub.f32 %v1136, %v1168
    %v1170 = vsub.f32 %v1139, %v1168
    %v1171 = vsub.f32 %v1142, %v1168
    %v1172 = vsub.f32 %v1145, %v1168
    %v1173 = vmul.f32 %v1169, %v1169
    %v1174 = vmul.f32 %v1170, %v1170
    %v1175 = vmul.f32 %v1171, %v1171
    %v1176 = vmul.f32 %v1172, %v1172
    %v1177 = vsel %vm648, %v1173, 0.0
    %v1178 = vsel %vm648, %v1174, 0.0
    %v1179 = vadd.f32 %v1177, %v1178
    %v1180 = vsel %vm648, %v1175, 0.0
    %v1181 = vadd.f32 %v1179, %v1180
    %v1182 = vsel %vm648, %v1176, 0.0
    %v1183 = vadd.f32 %v1181, %v1182
    %v1184 = vrot.slane %v1183, 4
    %v1185 = vadd.f32 %v1183, %v1184
    %v1186 = vrot.slane %v1185, 2
    %v1187 = vadd.f32 %v1185, %v1186
    %v1188 = vrot.slane %v1187, 1
    %v1189 = vadd.f32 %v1187, %v1188
    %v1190 = vmul.f32 %v1189, %v1167
    %v1191 = vadd.f32 %v1190, 1e-05
    %v1192 = vrsqrt.pop %v1191
    %v1193 = vmul.f32 %v1192, %v1191
    %v1194 = vmul.f32 %v1193, %v1192
    %v1195 = vmul.f32 0.5, %v1194
    %v1196 = vsub.f32 1.5, %v1195
    %v1197 = vmul.f32 %v1192, %v1196
    %vm1198 = vweird.f32 %v1191
    %vm1199 = vweird.f32 %v1192
    %vm1200 = vmor %vm1198, %vm1199
    %v1201 = vsel %vm1200, %v1192, %v1197
    %v1202 = vmul.f32 %v1147, %v1201
    %v1203 = vperm.slane %v1202, 0
    %v1204 = vmul.f32 %v1136, %v1203
    %v1205 = vmul.f32 %v1139, %v1203
    %v1206 = vmul.f32 %v1142, %v1203
    %v1207 = vmul.f32 %v1145, %v1203
    %v1208 = vmul.f32 %v1168, %v1202
    %v1210 = vrot.slane %v1208, 7
    %v1212 = vsub.f32 %v1147, %v1210
    %v1213 = vperm.slane %v1212, 1
    %v1214 = vadd.f32 %v1204, %v1213
    %v1215 = vadd.f32 %v1205, %v1213
    %v1216 = vadd.f32 %v1206, %v1213
    %v1217 = vadd.f32 %v1207, %v1213
    %v1218 = vmax.f32 %v1214, 0.0
    %v1219 = vmax.f32 %v1215, 0.0
    %v1220 = vmax.f32 %v1216, 0.0
    %v1221 = vmax.f32 %v1217, 0.0
    %1222 = vst.msk [vmem:[#allocation4] sm:$0xff] %vm648, %v1218
    %1223 = vst.msk [vmem:[#allocation4 + $0x8] sm:$0xff] %vm648, %v1219
    %1224 = vst.msk [vmem:[#allocation4 + $0x10] sm:$0xff] %vm648, %v1220
    %1225 = vst.msk [vmem:[#allocation4 + $0x18] sm:$0xff] %vm648, %v1221
    // Predicated region
    $region22: #{down_along_forward.1} parent=1 // pred_check
      _
    $region23: #{down_along_forward.1} parent=1 // pred_check_branch
      %1227 = sbr.rel (0) target = $region25
    $region24: #{down_along_forward.1} parent=1 // pred_region
      %1229 = vsyncadd [#allocation5], 0
      %s1230 = sshll.u32 [#allocation4], 4
      %s1231 = int_to_ptr.vmem [resolvable:$true] %s1230
      %s1232 = sshll.u32 %s5, 4
      %s1233 = int_to_ptr.hbm [resolvable:$true] %s1232
      %1238 = dma.vmem_to_hbm [thread:$0]  %s1231, 512, %s1233, [#allocation5], 128, 128, 8
    $region25: #{down_along_forward.1} parent=1 // pred_fallthru
      _
    // Predicated region
    $region26: #{down_along_forward.1} parent=1 // pred_check
      _
    $region27: #{down_along_forward.1} parent=1 // pred_check_branch
      %1240 = sbr.rel (0) target = $region29
    $region28: #{down_along_forward.1} parent=1 // pred_region
      %1242 = dma.done [#allocation5], 512
    $region29: #{down_along_forward.1} parent=1 // pred_fallthru
      _
    %1243 = vsyncpa [#allocation5], 1

</llo_original>
